<compile_context>
chip_gen: v5e
topology: v5e:2x2
jax: 0.10.0
libtpu: 0.0.40
codegen_flags: <defaults>
</compile_context>

<pallas_src>
import jax
import jax.numpy as jnp
from jax import lax
from jax.experimental import pallas as pl
from jax.experimental.pallas import tpu as pltpu


def _make_attn_kernel(C, HW, num_groups, eps, scale):
    cg = C // num_groups
    n_per_group = cg * HW

    def kernel(x_ref, gamma_ref, beta_ref,
               wq_ref, bq_ref, wk_ref, bk_ref, wv_ref, bv_ref,
               wp_ref, bp_ref, o_ref):
        # x_ref block: (1, C, HW) in VMEM -> work on the (C, HW) plane.
        x = x_ref[0].astype(jnp.float32)                       # (C, HW)

        # ---------------- GroupNorm(num_groups, C) ----------------
        s = jnp.sum(x, axis=1, keepdims=True)                  # (C, 1)
        ss = jnp.sum(x * x, axis=1, keepdims=True)             # (C, 1)
        if cg == 1:
            gsum, gsq = s, ss                                  # one channel per group
        else:
            gsum = jnp.sum(s.reshape(num_groups, cg), axis=1, keepdims=True)
            gsq = jnp.sum(ss.reshape(num_groups, cg), axis=1, keepdims=True)
        mean = gsum * (1.0 / n_per_group)                      # (G, 1)
        var = gsq * (1.0 / n_per_group) - mean * mean
        inv = lax.rsqrt(var + eps)
        if cg != 1:
            mean = jnp.broadcast_to(mean, (num_groups, cg)).reshape(C, 1)
            inv = jnp.broadcast_to(inv, (num_groups, cg)).reshape(C, 1)
        hn = (x - mean) * inv * gamma_ref[...] + beta_ref[...]  # (C, HW)

        # -------- 1x1 conv projections as MXU matmuls, in (HW, C) layout --------
        hnT = hn.T                                              # (HW, C)
        q = jnp.dot(hnT, wq_ref[...], preferred_element_type=jnp.float32) + bq_ref[...]
        k = jnp.dot(hnT, wk_ref[...], preferred_element_type=jnp.float32) + bk_ref[...]
        v = jnp.dot(hnT, wv_ref[...], preferred_element_type=jnp.float32) + bv_ref[...]

        # -------- attention: softmax(q @ k^T * C^-0.5) @ v --------
        scores = lax.dot_general(q, k, (((1,), (1,)), ((), ())),
                                 preferred_element_type=jnp.float32) * scale  # (HW, HW)
        scores = scores - jnp.max(scores, axis=-1, keepdims=True)
        p = jnp.exp(scores)
        p = p / jnp.sum(p, axis=-1, keepdims=True)

        a = jnp.dot(p, v, preferred_element_type=jnp.float32)                 # (HW, C)
        h = jnp.dot(a, wp_ref[...], preferred_element_type=jnp.float32) + bp_ref[...]

        # -------- residual add, back to (C, HW) lane-dense output --------
        o_ref[0] = (x + h.T).astype(o_ref.dtype)

    return kernel


def attn_block_forward(x, params, num_groups=32, eps=1e-5):
    """Forward pass of AttnBlock. params = (gamma, beta, wq, bq, wk, bk, wv, bv, wp, bp).
    Conv weights are PyTorch-shaped (C, C, 1, 1); gamma/beta/biases are (C,)."""
    gamma, beta, wq, bq, wk, bk, wv, bv, wp, bp = params
    B, C, H, W = x.shape
    HW = H * W
    assert C % num_groups == 0, "GroupNorm(32, C) requires C % 32 == 0"
    assert C % 8 == 0 and HW % 128 == 0, "block (C, HW) must be (8,128)-aligned"

    f32 = jnp.float32
    x2 = x.reshape(B, C, HW)
    g2 = gamma.reshape(C, 1).astype(f32)
    b2 = beta.reshape(C, 1).astype(f32)

    def prep_w(w):   # (O, I, 1, 1) -> (I, O) so the kernel right-multiplies.
        return jnp.transpose(w.reshape(C, C), (1, 0)).astype(f32)

    def prep_b(b):   # (C,) -> (1, C) row for broadcast over pixels.
        return b.reshape(1, C).astype(f32)

    wqT, wkT, wvT, wpT = (prep_w(w) for w in (wq, wk, wv, wp))
    bq2, bk2, bv2, bp2 = (prep_b(b) for b in (bq, bk, bv, bp))

    kernel = _make_attn_kernel(C, HW, num_groups, eps, float(C) ** (-0.5))

    x_spec = pl.BlockSpec((1, C, HW), lambda b: (b, 0, 0))
    w_spec = pl.BlockSpec((C, C), lambda b: (0, 0))
    brow_spec = pl.BlockSpec((1, C), lambda b: (0, 0))
    ccol_spec = pl.BlockSpec((C, 1), lambda b: (0, 0))

    out = pl.pallas_call(
        kernel,
        out_shape=jax.ShapeDtypeStruct((B, C, HW), x.dtype),
        grid=(B,),
        in_specs=[
            x_spec,
            ccol_spec, ccol_spec,                    # gamma, beta
            w_spec, brow_spec,                       # Wq^T, bq
            w_spec, brow_spec,                       # Wk^T, bk
            w_spec, brow_spec,                       # Wv^T, bv
            w_spec, brow_spec,                       # Wp^T, bp
        ],
        out_specs=pl.BlockSpec((1, C, HW), lambda b: (b, 0, 0)),
        compiler_params=pltpu.CompilerParams(dimension_semantics=("parallel",)),
    )(x2, g2, b2, wqT, bq2, wkT, bk2, wvT, bv2, wpT, bp2)

    return out.reshape(B, C, H, W)


def _ref_forward(x, params, num_groups=32, eps=1e-5):
    """Pure-XLA reference mirroring the PyTorch AttnBlock math."""
    gamma, beta, wq, bq, wk, bk, wv, bv, wp, bp = params
    B, C, H, W = x.shape
    hp = lax.Precision.HIGHEST
    cg = C // num_groups

    xg = x.reshape(B, num_groups, cg, H, W).astype(jnp.float32)
    mean = jnp.mean(xg, axis=(2, 3, 4), keepdims=True)
    var = jnp.mean((xg - mean) ** 2, axis=(2, 3, 4), keepdims=True)
    hn = ((xg - mean) / jnp.sqrt(var + eps)).reshape(B, C, H, W)
    hn = hn * gamma[None, :, None, None] + beta[None, :, None, None]

    def conv1x1(h, w, b):
        return (jnp.einsum('oi,bihw->bohw', w.reshape(C, C), h, precision=hp)
                + b[None, :, None, None])

    q = conv1x1(hn, wq, bq)
    k = conv1x1(hn, wk, bk)
    v = conv1x1(hn, wv, bv)
    qf = q.reshape(B, C, H * W).transpose(0, 2, 1)
    kf = k.reshape(B, C, H * W)
    att = jnp.einsum('bqc,bck->bqk', qf, kf, precision=hp) * (int(C) ** (-0.5))
    att = jax.nn.softmax(att, axis=-1)
    vf = v.reshape(B, C, H * W).transpose(0, 2, 1)
    ho = jnp.einsum('bqk,bkc->bqc', att, vf, precision=hp)
    ho = ho.transpose(0, 2, 1).reshape(B, C, H, W)
    ho = conv1x1(ho, wp, bp)
    return x + ho


if __name__ == "__main__":
    key = jax.random.PRNGKey(0)
    ks = jax.random.split(key, 11)

    # GroupNorm(32, in_ch) forces in_ch to be a multiple of 32 -> small shape uses C = 32.
    B, C, H, W = 2, 32, 16, 16
    x = jax.random.normal(ks[0], (B, C, H, W), jnp.float32)

    # Xavier-uniform 1x1 conv weights (fan_in = fan_out = C); non-trivial biases /
    # affine params so every code path is numerically exercised.
    bound = (6.0 / (2.0 * C)) ** 0.5
    wq = jax.random.uniform(ks[1], (C, C, 1, 1), jnp.float32, -bound, bound)
    wk = jax.random.uniform(ks[2], (C, C, 1, 1), jnp.float32, -bound, bound)
    wv = jax.random.uniform(ks[3], (C, C, 1, 1), jnp.float32, -bound, bound)
    wp = jax.random.uniform(ks[4], (C, C, 1, 1), jnp.float32, -bound, bound)
    bq = 0.1 * jax.random.normal(ks[5], (C,), jnp.float32)
    bk = 0.1 * jax.random.normal(ks[6], (C,), jnp.float32)
    bv = 0.1 * jax.random.normal(ks[7], (C,), jnp.float32)
    bp = 0.1 * jax.random.normal(ks[8], (C,), jnp.float32)
    gamma = 1.0 + 0.1 * jax.random.normal(ks[9], (C,), jnp.float32)
    beta = 0.1 * jax.random.normal(ks[10], (C,), jnp.float32)
    params = (gamma, beta, wq, bq, wk, bk, wv, bv, wp, bp)

    out = jax.block_until_ready(attn_block_forward(x, params))
    ref = jax.block_until_ready(_ref_forward(x, params))

    assert out.shape == (B, C, H, W), out.shape
    max_err = float(jnp.max(jnp.abs(out - ref)))
    assert jnp.allclose(out, ref, atol=2e-3, rtol=2e-3), max_err
    print("KERNEL_OK")
</pallas_src>

<mosaic_0001>
module attributes {stable_mosaic.version = 11 : i64} {
  func.func @kernel(%arg0: i32, %arg1: memref<1x32x256xf32, #tpu.memory_space<vmem>>, %arg2: memref<32x1xf32, #tpu.memory_space<vmem>>, %arg3: memref<32x1xf32, #tpu.memory_space<vmem>>, %arg4: memref<32x32xf32, #tpu.memory_space<vmem>>, %arg5: memref<1x32xf32, #tpu.memory_space<vmem>>, %arg6: memref<32x32xf32, #tpu.memory_space<vmem>>, %arg7: memref<1x32xf32, #tpu.memory_space<vmem>>, %arg8: memref<32x32xf32, #tpu.memory_space<vmem>>, %arg9: memref<1x32xf32, #tpu.memory_space<vmem>>, %arg10: memref<32x32xf32, #tpu.memory_space<vmem>>, %arg11: memref<1x32xf32, #tpu.memory_space<vmem>>, %arg12: memref<1x32x256xf32, #tpu.memory_space<vmem>>) attributes {dimension_semantics = [#tpu.dimension_semantics<parallel>], iteration_bounds = array<i64: 2>, scalar_prefetch = 0 : i64, scratch_operands = 0 : i64, tpu.core_type = #tpu.core_type<tc>, window_params = [{transform_indices = @transform_0, window_bounds = array<i64: 1, 32, 256>}, {pipeline_mode = #tpu.pipeline_mode<synchronous>, transform_indices = @transform_1, window_bounds = array<i64: 32, 1>}, {pipeline_mode = #tpu.pipeline_mode<synchronous>, transform_indices = @transform_2, window_bounds = array<i64: 32, 1>}, {pipeline_mode = #tpu.pipeline_mode<synchronous>, transform_indices = @transform_3, window_bounds = array<i64: 32, 32>}, {pipeline_mode = #tpu.pipeline_mode<synchronous>, transform_indices = @transform_4, window_bounds = array<i64: 1, 32>}, {pipeline_mode = #tpu.pipeline_mode<synchronous>, transform_indices = @transform_5, window_bounds = array<i64: 32, 32>}, {pipeline_mode = #tpu.pipeline_mode<synchronous>, transform_indices = @transform_6, window_bounds = array<i64: 1, 32>}, {pipeline_mode = #tpu.pipeline_mode<synchronous>, transform_indices = @transform_7, window_bounds = array<i64: 32, 32>}, {pipeline_mode = #tpu.pipeline_mode<synchronous>, transform_indices = @transform_8, window_bounds = array<i64: 1, 32>}, {pipeline_mode = #tpu.pipeline_mode<synchronous>, transform_indices = @transform_9, window_bounds = array<i64: 32, 32>}, {pipeline_mode = #tpu.pipeline_mode<synchronous>, transform_indices = @transform_10, window_bounds = array<i64: 1, 32>}, {transform_indices = @transform_11, window_bounds = array<i64: 1, 32, 256>}]} {
    %c0 = arith.constant 0 : index
    %c0_0 = arith.constant 0 : index
    %c0_1 = arith.constant 0 : index
    %0 = vector.load %arg1[%c0, %c0_0, %c0_1] : memref<1x32x256xf32, #tpu.memory_space<vmem>>, vector<1x32x256xf32>
    %1 = vector.shape_cast %0 : vector<1x32x256xf32> to vector<32x256xf32>
    %cst = arith.constant dense<0.000000e+00> : vector<32xf32>
    %2 = vector.multi_reduction <add>, %1, %cst [1] : vector<32x256xf32> to vector<32xf32>
    %3 = vector.shape_cast %2 : vector<32xf32> to vector<32x1xf32>
    %4 = arith.mulf %1, %1 : vector<32x256xf32>
    %cst_2 = arith.constant dense<0.000000e+00> : vector<32xf32>
    %5 = vector.multi_reduction <add>, %4, %cst_2 [1] : vector<32x256xf32> to vector<32xf32>
    %6 = vector.shape_cast %5 : vector<32xf32> to vector<32x1xf32>
    %cst_3 = arith.constant 3.906250e-03 : f32
    %7 = vector.broadcast %cst_3 : f32 to vector<32x1xf32>
    %8 = arith.mulf %3, %7 : vector<32x1xf32>
    %cst_4 = arith.constant 3.906250e-03 : f32
    %9 = vector.broadcast %cst_4 : f32 to vector<32x1xf32>
    %10 = arith.mulf %6, %9 : vector<32x1xf32>
    %11 = arith.mulf %8, %8 : vector<32x1xf32>
    %12 = arith.subf %10, %11 : vector<32x1xf32>
    %cst_5 = arith.constant 9.99999974E-6 : f32
    %13 = vector.broadcast %cst_5 : f32 to vector<32x1xf32>
    %14 = arith.addf %12, %13 : vector<32x1xf32>
    %15 = math.rsqrt %14 : vector<32x1xf32>
    %16 = vector.broadcast %8 : vector<32x1xf32> to vector<32x256xf32>
    %17 = arith.subf %1, %16 : vector<32x256xf32>
    %18 = vector.broadcast %15 : vector<32x1xf32> to vector<32x256xf32>
    %19 = arith.mulf %17, %18 : vector<32x256xf32>
    %c0_6 = arith.constant 0 : index
    %c0_7 = arith.constant 0 : index
    %20 = vector.load %arg2[%c0_6, %c0_7] : memref<32x1xf32, #tpu.memory_space<vmem>>, vector<32x1xf32>
    %21 = vector.broadcast %20 : vector<32x1xf32> to vector<32x256xf32>
    %22 = arith.mulf %19, %21 : vector<32x256xf32>
    %c0_8 = arith.constant 0 : index
    %c0_9 = arith.constant 0 : index
    %23 = vector.load %arg3[%c0_8, %c0_9] : memref<32x1xf32, #tpu.memory_space<vmem>>, vector<32x1xf32>
    %24 = vector.broadcast %23 : vector<32x1xf32> to vector<32x256xf32>
    %25 = arith.addf %22, %24 : vector<32x256xf32>
    %26 = tpu.transpose %25, [1, 0] : vector<32x256xf32> -> vector<256x32xf32>
    %c0_10 = arith.constant 0 : index
    %c0_11 = arith.constant 0 : index
    %27 = vector.load %arg4[%c0_10, %c0_11] : memref<32x32xf32, #tpu.memory_space<vmem>>, vector<32x32xf32>
    %cst_12 = arith.constant dense<0.000000e+00> : vector<256x32xf32>
    %28 = tpu.matmul %26, %27, %cst_12 {dimension_numbers = #tpu.dot_dimension_numbers<[1], [0], [0], [1], [0, 0, 1, 1], [], []>} : vector<256x32xf32>, vector<32x32xf32>, vector<256x32xf32> -> vector<256x32xf32>
    %c0_13 = arith.constant 0 : index
    %c0_14 = arith.constant 0 : index
    %29 = vector.load %arg5[%c0_13, %c0_14] : memref<1x32xf32, #tpu.memory_space<vmem>>, vector<1x32xf32>
    %30 = vector.broadcast %29 : vector<1x32xf32> to vector<256x32xf32>
    %31 = arith.addf %28, %30 : vector<256x32xf32>
    %c0_15 = arith.constant 0 : index
    %c0_16 = arith.constant 0 : index
    %32 = vector.load %arg6[%c0_15, %c0_16] : memref<32x32xf32, #tpu.memory_space<vmem>>, vector<32x32xf32>
    %cst_17 = arith.constant dense<0.000000e+00> : vector<256x32xf32>
    %33 = tpu.matmul %26, %32, %cst_17 {dimension_numbers = #tpu.dot_dimension_numbers<[1], [0], [0], [1], [0, 0, 1, 1], [], []>} : vector<256x32xf32>, vector<32x32xf32>, vector<256x32xf32> -> vector<256x32xf32>
    %c0_18 = arith.constant 0 : index
    %c0_19 = arith.constant 0 : index
    %34 = vector.load %arg7[%c0_18, %c0_19] : memref<1x32xf32, #tpu.memory_space<vmem>>, vector<1x32xf32>
    %35 = vector.broadcast %34 : vector<1x32xf32> to vector<256x32xf32>
    %36 = arith.addf %33, %35 : vector<256x32xf32>
    %c0_20 = arith.constant 0 : index
    %c0_21 = arith.constant 0 : index
    %37 = vector.load %arg8[%c0_20, %c0_21] : memref<32x32xf32, #tpu.memory_space<vmem>>, vector<32x32xf32>
    %cst_22 = arith.constant dense<0.000000e+00> : vector<256x32xf32>
    %38 = tpu.matmul %26, %37, %cst_22 {dimension_numbers = #tpu.dot_dimension_numbers<[1], [0], [0], [1], [0, 0, 1, 1], [], []>} : vector<256x32xf32>, vector<32x32xf32>, vector<256x32xf32> -> vector<256x32xf32>
    %c0_23 = arith.constant 0 : index
    %c0_24 = arith.constant 0 : index
    %39 = vector.load %arg9[%c0_23, %c0_24] : memref<1x32xf32, #tpu.memory_space<vmem>>, vector<1x32xf32>
    %40 = vector.broadcast %39 : vector<1x32xf32> to vector<256x32xf32>
    %41 = arith.addf %38, %40 : vector<256x32xf32>
    %cst_25 = arith.constant dense<0.000000e+00> : vector<256x256xf32>
    %42 = tpu.matmul %31, %36, %cst_25 {dimension_numbers = #tpu.dot_dimension_numbers<[1], [1], [0], [0], [0, 0, 1, 0], [], []>} : vector<256x32xf32>, vector<256x32xf32>, vector<256x256xf32> -> vector<256x256xf32>
    %cst_26 = arith.constant 0.176776692 : f32
    %43 = vector.broadcast %cst_26 : f32 to vector<256x256xf32>
    %44 = arith.mulf %42, %43 : vector<256x256xf32>
    %cst_27 = arith.constant dense<0xFF800000> : vector<256xf32>
    %45 = vector.multi_reduction <maximumf>, %44, %cst_27 [1] : vector<256x256xf32> to vector<256xf32>
    %46 = vector.shape_cast %45 : vector<256xf32> to vector<256x1xf32>
    %47 = vector.broadcast %46 : vector<256x1xf32> to vector<256x256xf32>
    %48 = arith.subf %44, %47 : vector<256x256xf32>
    %49 = math.exp %48 : vector<256x256xf32>
    %cst_28 = arith.constant dense<0.000000e+00> : vector<256xf32>
    %50 = vector.multi_reduction <add>, %49, %cst_28 [1] : vector<256x256xf32> to vector<256xf32>
    %51 = vector.shape_cast %50 : vector<256xf32> to vector<256x1xf32>
    %52 = vector.broadcast %51 : vector<256x1xf32> to vector<256x256xf32>
    %53 = arith.divf %49, %52 : vector<256x256xf32>
    %cst_29 = arith.constant dense<0.000000e+00> : vector<256x32xf32>
    %54 = tpu.matmul %53, %41, %cst_29 {dimension_numbers = #tpu.dot_dimension_numbers<[1], [0], [0], [1], [0, 0, 1, 1], [], []>} : vector<256x256xf32>, vector<256x32xf32>, vector<256x32xf32> -> vector<256x32xf32>
    %c0_30 = arith.constant 0 : index
    %c0_31 = arith.constant 0 : index
    %55 = vector.load %arg10[%c0_30, %c0_31] : memref<32x32xf32, #tpu.memory_space<vmem>>, vector<32x32xf32>
    %cst_32 = arith.constant dense<0.000000e+00> : vector<256x32xf32>
    %56 = tpu.matmul %54, %55, %cst_32 {dimension_numbers = #tpu.dot_dimension_numbers<[1], [0], [0], [1], [0, 0, 1, 1], [], []>} : vector<256x32xf32>, vector<32x32xf32>, vector<256x32xf32> -> vector<256x32xf32>
    %c0_33 = arith.constant 0 : index
    %c0_34 = arith.constant 0 : index
    %57 = vector.load %arg11[%c0_33, %c0_34] : memref<1x32xf32, #tpu.memory_space<vmem>>, vector<1x32xf32>
    %58 = vector.broadcast %57 : vector<1x32xf32> to vector<256x32xf32>
    %59 = arith.addf %56, %58 : vector<256x32xf32>
    %60 = tpu.transpose %59, [1, 0] : vector<256x32xf32> -> vector<32x256xf32>
    %61 = arith.addf %1, %60 : vector<32x256xf32>
    %c0_35 = arith.constant 0 : index
    %c0_36 = arith.constant 0 : index
    %c0_37 = arith.constant 0 : index
    %62 = vector.load %arg12[%c0_35, %c0_36, %c0_37] : memref<1x32x256xf32, #tpu.memory_space<vmem>>, vector<1x32x256xf32>
    %63 = vector.shape_cast %62 : vector<1x32x256xf32> to vector<32x256xf32>
    %64 = vector.shape_cast %61 : vector<32x256xf32> to vector<1x32x256xf32>
    tpu.vector_store %arg12[%c0_35, %c0_36, %c0_37], %64 {strides = array<i32>} : memref<1x32x256xf32, #tpu.memory_space<vmem>>, vector<1x32x256xf32>,
    return
  }
  func.func @transform_0(%arg0: i32) -> (i32, i32, i32) {
    %c0_i32 = arith.constant 0 : i32
    %c0_i32_0 = arith.constant 0 : i32
    %c0_i32_1 = arith.constant 0 : i32
    return %arg0, %c0_i32, %c0_i32_0 : i32, i32, i32
  }
  func.func @transform_1(%arg0: i32) -> (i32, i32) {
    %c0_i32 = arith.constant 0 : i32
    %c0_i32_0 = arith.constant 0 : i32
    %c0_i32_1 = arith.constant 0 : i32
    return %c0_i32, %c0_i32_0 : i32, i32
  }
  func.func @transform_2(%arg0: i32) -> (i32, i32) {
    %c0_i32 = arith.constant 0 : i32
    %c0_i32_0 = arith.constant 0 : i32
    %c0_i32_1 = arith.constant 0 : i32
    return %c0_i32, %c0_i32_0 : i32, i32
  }
  func.func @transform_3(%arg0: i32) -> (i32, i32) {
    %c0_i32 = arith.constant 0 : i32
    %c0_i32_0 = arith.constant 0 : i32
    %c0_i32_1 = arith.constant 0 : i32
    return %c0_i32, %c0_i32_0 : i32, i32
  }
  func.func @transform_4(%arg0: i32) -> (i32, i32) {
    %c0_i32 = arith.constant 0 : i32
    %c0_i32_0 = arith.constant 0 : i32
    %c0_i32_1 = arith.constant 0 : i32
    return %c0_i32, %c0_i32_0 : i32, i32
  }
  func.func @transform_5(%arg0: i32) -> (i32, i32) {
    %c0_i32 = arith.constant 0 : i32
    %c0_i32_0 = arith.constant 0 : i32
    %c0_i32_1 = arith.constant 0 : i32
    return %c0_i32, %c0_i32_0 : i32, i32
  }
  func.func @transform_6(%arg0: i32) -> (i32, i32) {
    %c0_i32 = arith.constant 0 : i32
    %c0_i32_0 = arith.constant 0 : i32
    %c0_i32_1 = arith.constant 0 : i32
    return %c0_i32, %c0_i32_0 : i32, i32
  }
  func.func @transform_7(%arg0: i32) -> (i32, i32) {
    %c0_i32 = arith.constant 0 : i32
    %c0_i32_0 = arith.constant 0 : i32
    %c0_i32_1 = arith.constant 0 : i32
    return %c0_i32, %c0_i32_0 : i32, i32
  }
  func.func @transform_8(%arg0: i32) -> (i32, i32) {
    %c0_i32 = arith.constant 0 : i32
    %c0_i32_0 = arith.constant 0 : i32
    %c0_i32_1 = arith.constant 0 : i32
    return %c0_i32, %c0_i32_0 : i32, i32
  }
  func.func @transform_9(%arg0: i32) -> (i32, i32) {
    %c0_i32 = arith.constant 0 : i32
    %c0_i32_0 = arith.constant 0 : i32
    %c0_i32_1 = arith.constant 0 : i32
    return %c0_i32, %c0_i32_0 : i32, i32
  }
  func.func @transform_10(%arg0: i32) -> (i32, i32) {
    %c0_i32 = arith.constant 0 : i32
    %c0_i32_0 = arith.constant 0 : i32
    %c0_i32_1 = arith.constant 0 : i32
    return %c0_i32, %c0_i32_0 : i32, i32
  }
  func.func @transform_11(%arg0: i32) -> (i32, i32, i32) {
    %c0_i32 = arith.constant 0 : i32
    %c0_i32_0 = arith.constant 0 : i32
    %c0_i32_1 = arith.constant 0 : i32
    return %arg0, %c0_i32, %c0_i32_0 : i32, i32, i32
  }
}

</mosaic_0001>

<llo_original>
// kernel: tpu_custom_call.1
$region0: #{tpu_custom_call.1}
  #allocation0 [shape = 'u32[]', space=smem, size = 0x4, offset = 0x4, fixed_abs, tag = 'smem constant byte address 0x4 - core index']
  #allocation1 [shape = 'u32[72,128]{1,0:T(1,128)}', space=vmem, size = 0x9000, scoped, tag = 'internal scratch']
  %s0 = inlined_call_operand.hbm [shape: f32[2,32,256], index: 0, kind: input, shape index: {}]
  %s1 = inlined_call_operand.vmem [shape: f32[32,1], index: 1, kind: input, shape index: {}]
  %s2 = inlined_call_operand.vmem [shape: f32[32,1], index: 2, kind: input, shape index: {}]
  %s3 = inlined_call_operand.vmem [shape: f32[32,32], index: 3, kind: input, shape index: {}]
  %s4 = inlined_call_operand.vmem [shape: f32[1,32], index: 4, kind: input, shape index: {}]
  %s5 = inlined_call_operand.vmem [shape: f32[32,32], index: 5, kind: input, shape index: {}]
  %s6 = inlined_call_operand.vmem [shape: f32[1,32], index: 6, kind: input, shape index: {}]
  %s7 = inlined_call_operand.hbm [shape: f32[32,32], index: 7, kind: input, shape index: {}]
  %s8 = inlined_call_operand.vmem [shape: f32[1,32], index: 8, kind: input, shape index: {}]
  %s9 = inlined_call_operand.hbm [shape: f32[32,32], index: 9, kind: input, shape index: {}]
  %s10 = inlined_call_operand.vmem [shape: f32[1,32], index: 10, kind: input, shape index: {}]
  %s11 = inlined_call_operand.hbm [shape: f32[2,32,256], index: 11, kind: output, shape index: {}]
  %s12 = sld [smem:[#allocation0]]
  $region89: #{tpu_custom_call.1} parent=0
    _
  %s14 = ssub.s32 1, %s12
  %s15 = scalar_select 0, %s14, %s12
  $region1: #{tpu_custom_call.1} parent=0
    #allocation2 [shape = 'u8[65536]{0}', space=vmem, size = 0x10000, scoped, tag = 'input window, operand 0']
    #allocation3 [shape = 's32[2]{0}', space=sflag, size = 0x8, scoped, tag = 'scoped memory for tpu_custom_call.1']
    #allocation4 [shape = 's32[2]{0}', space=sflag, size = 0x8, scoped, tag = 'scoped memory for tpu_custom_call.1']
    #allocation5 [shape = 'u8[16384]{0}', space=vmem, size = 0x4000, scoped, tag = 'input window, operand 7, single buffered']
    #allocation6 [shape = 's32[1]{0}', space=sflag, size = 0x4, scoped, tag = 'scoped memory for tpu_custom_call.1']
    #allocation7 [shape = 'u8[16384]{0}', space=vmem, size = 0x4000, scoped, tag = 'input window, operand 9, single buffered']
    #allocation8 [shape = 'u8[65536]{0}', space=vmem, size = 0x10000, scoped, tag = 'output window, operand 0']
    %16 = vsyncpa [#allocation3], 0
    %s17 = scalar_lea.sflag [#allocation3], 1
    %18 = vsyncpa %s17, 0
    %19 = vsyncpa [#allocation6], 0
    %20 = vsyncpa [#allocation4], 0
    %s21 = scalar_lea.sflag [#allocation4], 1
    %22 = vsyncpa %s21, 0
    loop: start=0, step=1, limit=4
    $region2: #{tpu_custom_call.1} parent=1 // loop_pre_header
      _
    $region3: #{tpu_custom_call.1} parent=1 // loop_header
      %s24 = sphi 0, %s28
      %p25 = scmp.ge.s32.totalorder %s24, 4
      %s34 = sphi 0, %s36
      %s37 = sphi 0, %s34
      %s38 = sphi 0, %s37
      %s54 = sphi 0, %s38
      %s58 = sphi 0, %s58
      %s60 = sphi 0, %s58
      %s61 = sphi 0, %s60
      %s75 = sphi 0, %s61
      %s79 = sphi 0, %s79
      %s81 = sphi 0, %s79
      %s82 = sphi 0, %s81
      %s96 = sphi 0, %s82
      %s100 = sphi 0, %s100
      %s102 = sphi 0, %s100
      %s103 = sphi 0, %s102
      %s117 = sphi 0, %s103
      %s121 = sphi 0, %s121
      %s123 = sphi 0, %s121
      %s124 = sphi 0, %s123
      %s138 = sphi 0, %s124
      %s142 = sphi 0, %s142
      %s144 = sphi 0, %s142
      %s145 = sphi 0, %s144
      %s159 = sphi 0, %s145
      %s163 = sphi 0, %s163
      %s165 = sphi 0, %s163
      %s166 = sphi 0, %s165
      %s180 = sphi 0, %s166
      %s184 = sphi 0, %s184
      %s186 = sphi 0, %s184
      %s187 = sphi 0, %s186
      %s201 = sphi 0, %s187
      %s205 = sphi 0, %s205
      %s207 = sphi 0, %s205
      %s208 = sphi 0, %s207
      %s222 = sphi 0, %s208
      %s226 = sphi 0, %s226
      %s228 = sphi 0, %s226
      %s229 = sphi 0, %s228
      %s243 = sphi 0, %s229
      %s247 = sphi 0, %s247
      %s249 = sphi 0, %s247
      %s250 = sphi 0, %s249
      %s264 = sphi 0, %s250
      %s270 = sphi 0, %s272
      %s273 = sphi 0, %s270
      %s274 = sphi 0, %s273
      %s290 = sphi 0, %s274
    $region4: #{tpu_custom_call.1} parent=1 // loop_header_branch
      %27 = sbr.rel (%p25) target = $region8
    $region5: #{tpu_custom_call.1} parent=1 // loop_body
      %s29 = ssub.s32 %s24, 1
      %s30 = ssub.s32 %s24, 2
      %s31 = sadd.s32 %s24, 1
      %s32 = ssub.s32 %s24, %s31
      %p33 = scmp.eq.s32.totalorder %s32, 0
      %s35 = sadd.s32 %s34, 1
      %s36 = scalar_select %p33, %s34, %s35
      %p39 = pneg %p33
      %p40 = scmp.eq.s32.totalorder %s24, 1
      %p41 = por %p39, %p40
      %p42 = scmp.ne.s32.totalorder %s34, %s37
      %p43 = scmp.eq.s32.totalorder %s24, 0
      %p44 = por %p42, %p43
      %p45 = scmp.ne.s32.totalorder %s34, %s37
      %p46 = scmp.eq.s32.totalorder %s29, 1
      %p47 = por %p45, %p46
      %p48 = scmp.ne.s32.totalorder %s37, %s38
      %p49 = scmp.eq.s32.totalorder %s29, 0
      %p50 = por %p48, %p49
      %p51 = scmp.ne.s32.totalorder %s37, %s38
      %p52 = scmp.eq.s32.totalorder %s30, 1
      %p53 = por %p51, %p52
      %p55 = scmp.ne.s32.totalorder %s38, %s54
      %p56 = scmp.eq.s32.totalorder %s30, 0
      %p57 = por %p55, %p56
      %s59 = sadd.s32 %s58, 1
      %p62 = scmp.eq.s32.totalorder %s24, 1
      %p63 = scmp.ne.s32.totalorder %s58, %s60
      %p64 = scmp.eq.s32.totalorder %s24, 0
      %p65 = por %p63, %p64
      %p66 = scmp.ne.s32.totalorder %s58, %s60
      %p67 = scmp.eq.s32.totalorder %s29, 1
      %p68 = por %p66, %p67
      %p69 = scmp.ne.s32.totalorder %s60, %s61
      %p70 = scmp.eq.s32.totalorder %s29, 0
      %p71 = por %p69, %p70
      %p72 = scmp.ne.s32.totalorder %s60, %s61
      %p73 = scmp.eq.s32.totalorder %s30, 1
      %p74 = por %p72, %p73
      %p76 = scmp.ne.s32.totalorder %s61, %s75
      %p77 = scmp.eq.s32.totalorder %s30, 0
      %p78 = por %p76, %p77
      %s80 = sadd.s32 %s79, 1
      %p83 = scmp.eq.s32.totalorder %s24, 1
      %p84 = scmp.ne.s32.totalorder %s79, %s81
      %p85 = scmp.eq.s32.totalorder %s24, 0
      %p86 = por %p84, %p85
      %p87 = scmp.ne.s32.totalorder %s79, %s81
      %p88 = scmp.eq.s32.totalorder %s29, 1
      %p89 = por %p87, %p88
      %p90 = scmp.ne.s32.totalorder %s81, %s82
      %p91 = scmp.eq.s32.totalorder %s29, 0
      %p92 = por %p90, %p91
      %p93 = scmp.ne.s32.totalorder %s81, %s82
      %p94 = scmp.eq.s32.totalorder %s30, 1
      %p95 = por %p93, %p94
      %p97 = scmp.ne.s32.totalorder %s82, %s96
      %p98 = scmp.eq.s32.totalorder %s30, 0
      %p99 = por %p97, %p98
      %s101 = sadd.s32 %s100, 1
      %p104 = scmp.eq.s32.totalorder %s24, 1
      %p105 = scmp.ne.s32.totalorder %s100, %s102
      %p106 = scmp.eq.s32.totalorder %s24, 0
      %p107 = por %p105, %p106
      %p108 = scmp.ne.s32.totalorder %s100, %s102
      %p109 = scmp.eq.s32.totalorder %s29, 1
      %p110 = por %p108, %p109
      %p111 = scmp.ne.s32.totalorder %s102, %s103
      %p112 = scmp.eq.s32.totalorder %s29, 0
      %p113 = por %p111, %p112
      %p114 = scmp.ne.s32.totalorder %s102, %s103
      %p115 = scmp.eq.s32.totalorder %s30, 1
      %p116 = por %p114, %p115
      %p118 = scmp.ne.s32.totalorder %s103, %s117
      %p119 = scmp.eq.s32.totalorder %s30, 0
      %p120 = por %p118, %p119
      %s122 = sadd.s32 %s121, 1
      %p125 = scmp.eq.s32.totalorder %s24, 1
      %p126 = scmp.ne.s32.totalorder %s121, %s123
      %p127 = scmp.eq.s32.totalorder %s24, 0
      %p128 = por %p126, %p127
      %p129 = scmp.ne.s32.totalorder %s121, %s123
      %p130 = scmp.eq.s32.totalorder %s29, 1
      %p131 = por %p129, %p130
      %p132 = scmp.ne.s32.totalorder %s123, %s124
      %p133 = scmp.eq.s32.totalorder %s29, 0
      %p134 = por %p132, %p133
      %p135 = scmp.ne.s32.totalorder %s123, %s124
      %p136 = scmp.eq.s32.totalorder %s30, 1
      %p137 = por %p135, %p136
      %p139 = scmp.ne.s32.totalorder %s124, %s138
      %p140 = scmp.eq.s32.totalorder %s30, 0
      %p141 = por %p139, %p140
      %s143 = sadd.s32 %s142, 1
      %p146 = scmp.eq.s32.totalorder %s24, 1
      %p147 = scmp.ne.s32.totalorder %s142, %s144
      %p148 = scmp.eq.s32.totalorder %s24, 0
      %p149 = por %p147, %p148
      %p150 = scmp.ne.s32.totalorder %s142, %s144
      %p151 = scmp.eq.s32.totalorder %s29, 1
      %p152 = por %p150, %p151
      %p153 = scmp.ne.s32.totalorder %s144, %s145
      %p154 = scmp.eq.s32.totalorder %s29, 0
      %p155 = por %p153, %p154
      %p156 = scmp.ne.s32.totalorder %s144, %s145
      %p157 = scmp.eq.s32.totalorder %s30, 1
      %p158 = por %p156, %p157
      %p160 = scmp.ne.s32.totalorder %s145, %s159
      %p161 = scmp.eq.s32.totalorder %s30, 0
      %p162 = por %p160, %p161
      %s164 = sadd.s32 %s163, 1
      %p167 = scmp.eq.s32.totalorder %s24, 1
      %p168 = scmp.ne.s32.totalorder %s163, %s165
      %p169 = scmp.eq.s32.totalorder %s24, 0
      %p170 = por %p168, %p169
      %p171 = scmp.ne.s32.totalorder %s163, %s165
      %p172 = scmp.eq.s32.totalorder %s29, 1
      %p173 = por %p171, %p172
      %p174 = scmp.ne.s32.totalorder %s165, %s166
      %p175 = scmp.eq.s32.totalorder %s29, 0
      %p176 = por %p174, %p175
      %p177 = scmp.ne.s32.totalorder %s165, %s166
      %p178 = scmp.eq.s32.totalorder %s30, 1
      %p179 = por %p177, %p178
      %p181 = scmp.ne.s32.totalorder %s166, %s180
      %p182 = scmp.eq.s32.totalorder %s30, 0
      %p183 = por %p181, %p182
      %s185 = sadd.s32 %s184, 1
      %p188 = scmp.eq.s32.totalorder %s24, 1
      %p189 = scmp.ne.s32.totalorder %s184, %s186
      %p190 = scmp.eq.s32.totalorder %s24, 0
      %p191 = por %p189, %p190
      %p192 = scmp.ne.s32.totalorder %s184, %s186
      %p193 = scmp.eq.s32.totalorder %s29, 1
      %p194 = por %p192, %p193
      %p195 = scmp.ne.s32.totalorder %s186, %s187
      %p196 = scmp.eq.s32.totalorder %s29, 0
      %p197 = por %p195, %p196
      %p198 = scmp.ne.s32.totalorder %s186, %s187
      %p199 = scmp.eq.s32.totalorder %s30, 1
      %p200 = por %p198, %p199
      %p202 = scmp.ne.s32.totalorder %s187, %s201
      %p203 = scmp.eq.s32.totalorder %s30, 0
      %p204 = por %p202, %p203
      %s206 = sadd.s32 %s205, 1
      %p209 = scmp.eq.s32.totalorder %s24, 1
      %p210 = scmp.ne.s32.totalorder %s205, %s207
      %p211 = scmp.eq.s32.totalorder %s24, 0
      %p212 = por %p210, %p211
      %p213 = scmp.ne.s32.totalorder %s205, %s207
      %p214 = scmp.eq.s32.totalorder %s29, 1
      %p215 = por %p213, %p214
      %p216 = scmp.ne.s32.totalorder %s207, %s208
      %p217 = scmp.eq.s32.totalorder %s29, 0
      %p218 = por %p216, %p217
      %p219 = scmp.ne.s32.totalorder %s207, %s208
      %p220 = scmp.eq.s32.totalorder %s30, 1
      %p221 = por %p219, %p220
      %p223 = scmp.ne.s32.totalorder %s208, %s222
      %p224 = scmp.eq.s32.totalorder %s30, 0
      %p225 = por %p223, %p224
      %s227 = sadd.s32 %s226, 1
      %p230 = scmp.eq.s32.totalorder %s24, 1
      %p231 = scmp.ne.s32.totalorder %s226, %s228
      %p232 = scmp.eq.s32.totalorder %s24, 0
      %p233 = por %p231, %p232
      %p234 = scmp.ne.s32.totalorder %s226, %s228
      %p235 = scmp.eq.s32.totalorder %s29, 1
      %p236 = por %p234, %p235
      %p237 = scmp.ne.s32.totalorder %s228, %s229
      %p238 = scmp.eq.s32.totalorder %s29, 0
      %p239 = por %p237, %p238
      %p240 = scmp.ne.s32.totalorder %s228, %s229
      %p241 = scmp.eq.s32.totalorder %s30, 1
      %p242 = por %p240, %p241
      %p244 = scmp.ne.s32.totalorder %s229, %s243
      %p245 = scmp.eq.s32.totalorder %s30, 0
      %p246 = por %p244, %p245
      %s248 = sadd.s32 %s247, 1
      %p251 = scmp.eq.s32.totalorder %s24, 1
      %p252 = scmp.ne.s32.totalorder %s247, %s249
      %p253 = scmp.eq.s32.totalorder %s24, 0
      %p254 = por %p252, %p253
      %p255 = scmp.ne.s32.totalorder %s247, %s249
      %p256 = scmp.eq.s32.totalorder %s29, 1
      %p257 = por %p255, %p256
      %p258 = scmp.ne.s32.totalorder %s249, %s250
      %p259 = scmp.eq.s32.totalorder %s29, 0
      %p260 = por %p258, %p259
      %p261 = scmp.ne.s32.totalorder %s249, %s250
      %p262 = scmp.eq.s32.totalorder %s30, 1
      %p263 = por %p261, %p262
      %p265 = scmp.ne.s32.totalorder %s250, %s264
      %p266 = scmp.eq.s32.totalorder %s30, 0
      %p267 = por %p265, %p266
      %s268 = ssub.s32 %s24, %s31
      %p269 = scmp.eq.s32.totalorder %s268, 0
      %s271 = sadd.s32 %s270, 1
      %s272 = scalar_select %p269, %s270, %s271
      %p275 = pneg %p269
      %p276 = scmp.eq.s32.totalorder %s24, 1
      %p277 = por %p275, %p276
      %p278 = scmp.ne.s32.totalorder %s270, %s273
      %p279 = scmp.eq.s32.totalorder %s24, 0
      %p280 = por %p278, %p279
      %p281 = scmp.ne.s32.totalorder %s270, %s273
      %p282 = scmp.eq.s32.totalorder %s29, 1
      %p283 = por %p281, %p282
      %p284 = scmp.ne.s32.totalorder %s273, %s274
      %p285 = scmp.eq.s32.totalorder %s29, 0
      %p286 = por %p284, %p285
      %p287 = scmp.ne.s32.totalorder %s273, %s274
      %p288 = scmp.eq.s32.totalorder %s30, 1
      %p289 = por %p287, %p288
      %p291 = scmp.ne.s32.totalorder %s274, %s290
      %p292 = scmp.eq.s32.totalorder %s30, 0
      %p293 = por %p291, %p292
      %p294 = scmp.le.s32.totalorder 1, %s24
      %p295 = scmp.lt.s32.totalorder %s24, 3
      %p296 = pnand %p294, %p295
      %p297 = pneg %p296
      // Predicated region
      $region9: #{tpu_custom_call.1} parent=5 // pred_check
        _
      $region10: #{tpu_custom_call.1} parent=5 // pred_check_branch
        %299 = sbr.rel (%p296) target = $region12
      $region11: #{tpu_custom_call.1} parent=5 // pred_region
        %s300 = ssub.s32 %s24, 1
        // Predicated region
        $region13: #{tpu_custom_call.1} parent=11 // pred_check
          %p301 = pneg %p71
        $region14: #{tpu_custom_call.1} parent=11 // pred_check_branch
          %303 = sbr.rel (%p301) target = $region16
        $region15: #{tpu_custom_call.1} parent=11 // pred_region
          _
        $region16: #{tpu_custom_call.1} parent=11 // pred_fallthru
          _
        // Predicated region
        $region17: #{tpu_custom_call.1} parent=11 // pred_check
          %p304 = pneg %p92
        $region18: #{tpu_custom_call.1} parent=11 // pred_check_branch
          %306 = sbr.rel (%p304) target = $region20
        $region19: #{tpu_custom_call.1} parent=11 // pred_region
          _
        $region20: #{tpu_custom_call.1} parent=11 // pred_fallthru
          _
        // Predicated region
        $region21: #{tpu_custom_call.1} parent=11 // pred_check
          %p307 = pneg %p113
        $region22: #{tpu_custom_call.1} parent=11 // pred_check_branch
          %309 = sbr.rel (%p307) target = $region24
        $region23: #{tpu_custom_call.1} parent=11 // pred_region
          _
        $region24: #{tpu_custom_call.1} parent=11 // pred_fallthru
          _
        // Predicated region
        $region25: #{tpu_custom_call.1} parent=11 // pred_check
          %p310 = pneg %p134
        $region26: #{tpu_custom_call.1} parent=11 // pred_check_branch
          %312 = sbr.rel (%p310) target = $region28
        $region27: #{tpu_custom_call.1} parent=11 // pred_region
          _
        $region28: #{tpu_custom_call.1} parent=11 // pred_fallthru
          _
        // Predicated region
        $region29: #{tpu_custom_call.1} parent=11 // pred_check
          %p313 = pneg %p155
        $region30: #{tpu_custom_call.1} parent=11 // pred_check_branch
          %315 = sbr.rel (%p313) target = $region32
        $region31: #{tpu_custom_call.1} parent=11 // pred_region
          _
        $region32: #{tpu_custom_call.1} parent=11 // pred_fallthru
          _
        // Predicated region
        $region33: #{tpu_custom_call.1} parent=11 // pred_check
          %p316 = pneg %p176
        $region34: #{tpu_custom_call.1} parent=11 // pred_check_branch
          %318 = sbr.rel (%p316) target = $region36
        $region35: #{tpu_custom_call.1} parent=11 // pred_region
          _
        $region36: #{tpu_custom_call.1} parent=11 // pred_fallthru
          _
        // Predicated region
        $region37: #{tpu_custom_call.1} parent=11 // pred_check
          %p319 = pneg %p197
        $region38: #{tpu_custom_call.1} parent=11 // pred_check_branch
          %321 = sbr.rel (%p319) target = $region40
        $region39: #{tpu_custom_call.1} parent=11 // pred_region
          %323 = vsyncadd [#allocation6], 0
          %s324 = sshll.u32 %s7, 4
          %s325 = int_to_ptr.hbm [resolvable:$true] %s324
          %s326 = sshll.u32 [#allocation5], 4
          %s327 = int_to_ptr.vmem [resolvable:$true] %s326
          %332 = dma.hbm_to_vmem [thread:$0]  %s325, 512, %s327, [#allocation6], 128, 128, 8
        $region40: #{tpu_custom_call.1} parent=11 // pred_fallthru
          _
        // Predicated region
        $region41: #{tpu_custom_call.1} parent=11 // pred_check
          %p333 = pneg %p218
        $region42: #{tpu_custom_call.1} parent=11 // pred_check_branch
          %335 = sbr.rel (%p333) target = $region44
        $region43: #{tpu_custom_call.1} parent=11 // pred_region
          _
        $region44: #{tpu_custom_call.1} parent=11 // pred_fallthru
          _
        // Predicated region
        $region45: #{tpu_custom_call.1} parent=11 // pred_check
          %p336 = pneg %p239
        $region46: #{tpu_custom_call.1} parent=11 // pred_check_branch
          %338 = sbr.rel (%p336) target = $region48
        $region47: #{tpu_custom_call.1} parent=11 // pred_region
          %340 = vsyncadd [#allocation6], 0
          %s341 = sshll.u32 %s9, 4
          %s342 = int_to_ptr.hbm [resolvable:$true] %s341
          %s343 = sshll.u32 [#allocation7], 4
          %s344 = int_to_ptr.vmem [resolvable:$true] %s343
          %349 = dma.hbm_to_vmem [thread:$0]  %s342, 512, %s344, [#allocation6], 128, 128, 8
        $region48: #{tpu_custom_call.1} parent=11 // pred_fallthru
          _
        // Predicated region
        $region49: #{tpu_custom_call.1} parent=11 // pred_check
          %p350 = pneg %p260
        $region50: #{tpu_custom_call.1} parent=11 // pred_check_branch
          %352 = sbr.rel (%p350) target = $region52
        $region51: #{tpu_custom_call.1} parent=11 // pred_region
          _
        $region52: #{tpu_custom_call.1} parent=11 // pred_fallthru
          _
      $region12: #{tpu_custom_call.1} parent=5 // pred_fallthru
        _
      %p353 = scmp.lt.s32.totalorder %s24, 2
      // Predicated region
      $region53: #{tpu_custom_call.1} parent=5 // pred_check
        %p354 = pneg %p353
      $region54: #{tpu_custom_call.1} parent=5 // pred_check_branch
        %356 = sbr.rel (%p354) target = $region56
      $region55: #{tpu_custom_call.1} parent=5 // pred_region
        // Predicated region
        $region57: #{tpu_custom_call.1} parent=55 // pred_check
          %p357 = pneg %p44
        $region58: #{tpu_custom_call.1} parent=55 // pred_check_branch
          %359 = sbr.rel (%p357) target = $region60
        $region59: #{tpu_custom_call.1} parent=55 // pred_region
          %s360 = sand.u32 %s34, 1
          %s361 = scalar_lea.sflag [#allocation3], %s360
          %s362 = sand.u32 %s34, 1
          %s363 = smul.addr %s362, 64
          %s364 = scalar_lea.vmem [#allocation2], %s363
          %366 = vsyncadd %s361, 0
          %s367 = smul.addr %s24, 8
          %s368 = smul.addr %s367, 8
          %s369 = scalar_lea.hbm %s0, %s368
          %s370 = sshll.u32 %s369, 4
          %s371 = int_to_ptr.hbm [resolvable:$true] %s370
          %s372 = sshll.u32 %s364, 4
          %s373 = int_to_ptr.vmem [resolvable:$true] %s372
          %378 = dma.hbm_to_vmem [thread:$0]  %s371, 1024, %s373, %s361, 256, 256, 16
        $region60: #{tpu_custom_call.1} parent=55 // pred_fallthru
          _
      $region56: #{tpu_custom_call.1} parent=5 // pred_fallthru
        _
      %p379 = scmp.le.s32.totalorder 1, %s24
      %p380 = scmp.lt.s32.totalorder %s24, 3
      %p381 = pnand %p379, %p380
      %p382 = pneg %p381
      // Predicated region
      $region61: #{tpu_custom_call.1} parent=5 // pred_check
        _
      $region62: #{tpu_custom_call.1} parent=5 // pred_check_branch
        %384 = sbr.rel (%p381) target = $region64
      $region63: #{tpu_custom_call.1} parent=5 // pred_region
        %s385 = ssub.s32 %s24, 1
        %s386 = sand.u32 %s37, 1
        %s387 = scalar_lea.sflag [#allocation3], %s386
        %s388 = sand.u32 %s37, 1
        %s389 = smul.addr %s388, 64
        %s390 = scalar_lea.vmem [#allocation2], %s389
        // Predicated region
        $region65: #{tpu_custom_call.1} parent=63 // pred_check
          %p391 = pneg %p50
        $region66: #{tpu_custom_call.1} parent=63 // pred_check_branch
          %393 = sbr.rel (%p391) target = $region68
        $region67: #{tpu_custom_call.1} parent=63 // pred_region
          %395 = dma.done %s387, 1024
        $region68: #{tpu_custom_call.1} parent=63 // pred_fallthru
          _
        // Predicated region
        $region69: #{tpu_custom_call.1} parent=63 // pred_check
          %p396 = pneg %p197
        $region70: #{tpu_custom_call.1} parent=63 // pred_check_branch
          %398 = sbr.rel (%p396) target = $region72
        $region71: #{tpu_custom_call.1} parent=63 // pred_region
          %400 = dma.done [#allocation6], 512
        $region72: #{tpu_custom_call.1} parent=63 // pred_fallthru
          _
        // Predicated region
        $region73: #{tpu_custom_call.1} parent=63 // pred_check
          %p401 = pneg %p239
        $region74: #{tpu_custom_call.1} parent=63 // pred_check_branch
          %403 = sbr.rel (%p401) target = $region76
        $region75: #{tpu_custom_call.1} parent=63 // pred_region
          %405 = dma.done [#allocation6], 512
        $region76: #{tpu_custom_call.1} parent=63 // pred_fallthru
          _
        %s406 = sand.u32 %s37, 1
        %s407 = scalar_lea.sflag [#allocation3], %s406
        %s408 = sand.u32 %s37, 1
        %s409 = smul.addr %s408, 64
        %s410 = scalar_lea.vmem [#allocation2], %s409
        %p411 = pneg %p50
        %p412 = pneg %p47
        %p413 = pneg %p71
        %p414 = pneg %p68
        %p415 = pneg %p92
        %p416 = pneg %p89
        %p417 = pneg %p113
        %p418 = pneg %p110
        %p419 = pneg %p134
        %p420 = pneg %p131
        %p421 = pneg %p155
        %p422 = pneg %p152
        %p423 = pneg %p176
        %p424 = pneg %p173
        %p425 = pneg %p197
        %p426 = pneg %p194
        %p427 = pneg %p218
        %p428 = pneg %p215
        %p429 = pneg %p239
        %p430 = pneg %p236
        %p431 = pneg %p260
        %p432 = pneg %p257
        %p433 = pneg %p286
        %p434 = pneg %p283
        %s435 = sand.u32 %s273, 1
        %s436 = scalar_lea.sflag [#allocation4], %s435
        %s437 = sand.u32 %s273, 1
        %s438 = smul.addr %s437, 64
        %s439 = scalar_lea.vmem [#allocation8], %s438
        %v440 = vld [vmem:[%s390] sm:$0xff]
        %v441 = vld [vmem:[%s390 + $0x8] sm:$0xff]
        %v442 = vld [vmem:[%s390 + $0x10] sm:$0xff]
        %v443 = vld [vmem:[%s390 + $0x18] sm:$0xff]
        %v444 = vld [vmem:[%s390 + $0x20] sm:$0xff]
        %v445 = vld [vmem:[%s390 + $0x28] sm:$0xff]
        %v446 = vld [vmem:[%s390 + $0x30] sm:$0xff]
        %v447 = vld [vmem:[%s390 + $0x38] sm:$0xff]
        %v448 = vadd.f32 %v440, %v441
        %449 = vadd.xlane.f32.xlu0 %v448
        %v450 = vpop.xlane.xlu0 %449
        %v451 = vadd.f32 %v442, %v443
        %452 = vadd.xlane.f32.xlu0 %v451
        %v453 = vpop.xlane.xlu0 %452
        %v454 = vadd.f32 %v444, %v445
        %455 = vadd.xlane.f32.xlu0 %v454
        %v456 = vpop.xlane.xlu0 %455
        %v457 = vadd.f32 %v446, %v447
        %458 = vadd.xlane.f32.xlu0 %v457
        %v459 = vpop.xlane.xlu0 %458
        %v460 = vmul.f32 %v440, %v440
        %v461 = vmul.f32 %v441, %v441
        %v462 = vmul.f32 %v442, %v442
        %v463 = vmul.f32 %v443, %v443
        %v464 = vmul.f32 %v444, %v444
        %v465 = vmul.f32 %v445, %v445
        %v466 = vmul.f32 %v446, %v446
        %v467 = vmul.f32 %v447, %v447
        %v468 = vadd.f32 %v460, %v461
        %469 = vadd.xlane.f32.xlu0 %v468
        %v470 = vpop.xlane.xlu0 %469
        %v471 = vadd.f32 %v462, %v463
        %472 = vadd.xlane.f32.xlu0 %v471
        %v473 = vpop.xlane.xlu0 %472
        %v474 = vadd.f32 %v464, %v465
        %475 = vadd.xlane.f32.xlu0 %v474
        %v476 = vpop.xlane.xlu0 %475
        %v477 = vadd.f32 %v466, %v467
        %478 = vadd.xlane.f32.xlu0 %v477
        %v479 = vpop.xlane.xlu0 %478
        %v480 = vmul.f32 %v450, 0.00390625
        %v481 = vmul.f32 %v453, 0.00390625
        %v482 = vmul.f32 %v456, 0.00390625
        %v483 = vmul.f32 %v459, 0.00390625
        %v484 = vmul.f32 %v470, 0.00390625
        %v485 = vmul.f32 %v473, 0.00390625
        %v486 = vmul.f32 %v476, 0.00390625
        %v487 = vmul.f32 %v479, 0.00390625
        %v488 = vmul.f32 %v480, %v480
        %v489 = vmul.f32 %v481, %v481
        %v490 = vmul.f32 %v482, %v482
        %v491 = vmul.f32 %v483, %v483
        %v492 = vsub.f32 %v484, %v488
        %v493 = vsub.f32 %v485, %v489
        %v494 = vsub.f32 %v486, %v490
        %v495 = vsub.f32 %v487, %v491
        %v496 = vadd.f32 %v492, 1e-05
        %v497 = vadd.f32 %v493, 1e-05
        %v498 = vadd.f32 %v494, 1e-05
        %v499 = vadd.f32 %v495, 1e-05
        %v500 = vrsqrt.pop %v496
        %v501 = vmul.f32 %v500, %v496
        %v502 = vmul.f32 %v501, %v500
        %v503 = vmul.f32 0.5, %v502
        %v504 = vsub.f32 1.5, %v503
        %v505 = vmul.f32 %v500, %v504
        %vm506 = vweird.f32 %v496
        %vm507 = vweird.f32 %v500
        %vm508 = vmor %vm506, %vm507
        %v509 = vsel %vm508, %v500, %v505
        %v510 = vrsqrt.pop %v497
        %v511 = vmul.f32 %v510, %v497
        %v512 = vmul.f32 %v511, %v510
        %v513 = vmul.f32 0.5, %v512
        %v514 = vsub.f32 1.5, %v513
        %v515 = vmul.f32 %v510, %v514
        %vm516 = vweird.f32 %v497
        %vm517 = vweird.f32 %v510
        %vm518 = vmor %vm516, %vm517
        %v519 = vsel %vm518, %v510, %v515
        %v520 = vrsqrt.pop %v498
        %v521 = vmul.f32 %v520, %v498
        %v522 = vmul.f32 %v521, %v520
        %v523 = vmul.f32 0.5, %v522
        %v524 = vsub.f32 1.5, %v523
        %v525 = vmul.f32 %v520, %v524
        %vm526 = vweird.f32 %v498
        %vm527 = vweird.f32 %v520
        %vm528 = vmor %vm526, %vm527
        %v529 = vsel %vm528, %v520, %v525
        %v530 = vrsqrt.pop %v499
        %v531 = vmul.f32 %v530, %v499
        %v532 = vmul.f32 %v531, %v530
        %v533 = vmul.f32 0.5, %v532
        %v534 = vsub.f32 1.5, %v533
        %v535 = vmul.f32 %v530, %v534
        %vm536 = vweird.f32 %v499
        %vm537 = vweird.f32 %v530
        %vm538 = vmor %vm536, %vm537
        %v539 = vsel %vm538, %v530, %v535
        %v540 = vsub.f32 %v440, %v480
        %v541 = vsub.f32 %v441, %v480
        %v542 = vsub.f32 %v442, %v481
        %v543 = vsub.f32 %v443, %v481
        %v544 = vsub.f32 %v444, %v482
        %v545 = vsub.f32 %v445, %v482
        %v546 = vsub.f32 %v446, %v483
        %v547 = vsub.f32 %v447, %v483
        %v548 = vmul.f32 %v540, %v509
        %v549 = vmul.f32 %v541, %v509
        %v550 = vmul.f32 %v542, %v519
        %v551 = vmul.f32 %v543, %v519
        %v552 = vmul.f32 %v544, %v529
        %v553 = vmul.f32 %v545, %v529
        %v554 = vmul.f32 %v546, %v539
        %v555 = vmul.f32 %v547, %v539
        %v556 = vld [vmem:[%s1] sm:$0xff]
        %v557 = vld [vmem:[%s1 + $0x8] sm:$0xff]
        %v558 = vld [vmem:[%s1 + $0x10] sm:$0xff]
        %v559 = vld [vmem:[%s1 + $0x18] sm:$0xff]
        %561 = vset.pattern.permute.xlu0 0
        %562 = vperm.xlu0 %561, %v556
        %v563 = vpop.permute.xlu0 %562
        %566 = vset.pattern.permute.xlu0 0
        %567 = vperm.xlu0 %566, %v557
        %v568 = vpop.permute.xlu0 %567
        %571 = vset.pattern.permute.xlu0 0
        %572 = vperm.xlu0 %571, %v558
        %v573 = vpop.permute.xlu0 %572
        %576 = vset.pattern.permute.xlu0 0
        %577 = vperm.xlu0 %576, %v559
        %v578 = vpop.permute.xlu0 %577
        %v580 = vmul.f32 %v548, %v563
        %v581 = vmul.f32 %v549, %v563
        %v582 = vmul.f32 %v550, %v568
        %v583 = vmul.f32 %v551, %v568
        %v584 = vmul.f32 %v552, %v573
        %v585 = vmul.f32 %v553, %v573
        %v586 = vmul.f32 %v554, %v578
        %v587 = vmul.f32 %v555, %v578
        %v588 = vld [vmem:[%s2] sm:$0xff]
        %v589 = vld [vmem:[%s2 + $0x8] sm:$0xff]
        %v590 = vld [vmem:[%s2 + $0x10] sm:$0xff]
        %v591 = vld [vmem:[%s2 + $0x18] sm:$0xff]
        %593 = vset.pattern.permute.xlu0 0
        %594 = vperm.xlu0 %593, %v588
        %v595 = vpop.permute.xlu0 %594
        %598 = vset.pattern.permute.xlu0 0
        %599 = vperm.xlu0 %598, %v589
        %v600 = vpop.permute.xlu0 %599
        %603 = vset.pattern.permute.xlu0 0
        %604 = vperm.xlu0 %603, %v590
        %v605 = vpop.permute.xlu0 %604
        %608 = vset.pattern.permute.xlu0 0
        %609 = vperm.xlu0 %608, %v591
        %v610 = vpop.permute.xlu0 %609
        %v612 = vadd.f32 %v580, %v595
        %v613 = vadd.f32 %v581, %v595
        %v614 = vadd.f32 %v582, %v600
        %v615 = vadd.f32 %v583, %v600
        %v616 = vadd.f32 %v584, %v605
        %v617 = vadd.f32 %v585, %v605
        %v618 = vadd.f32 %v586, %v610
        %v619 = vadd.f32 %v587, %v610
        %620 = vxpose.xlu0.b32.start [1/16] %v612, 128
        %621 = vxpose.xlu0.b32.cont [2/16] %v614, 128
        %622 = vxpose.xlu0.b32.cont [3/16] %v616, 128
        %623 = vxpose.xlu0.b32.cont [4/16] %v618, 128
        %624 = vxpose.xlu0.b32.cont [5/16] 0.0, 128
        %625 = vxpose.xlu0.b32.cont [6/16] 0.0, 128
        %626 = vxpose.xlu0.b32.cont [7/16] 0.0, 128
        %627 = vxpose.xlu0.b32.cont [8/16] 0.0, 128
        %628 = vxpose.xlu0.b32.cont [9/16] 0.0, 128
        %629 = vxpose.xlu0.b32.cont [10/16] 0.0, 128
        %630 = vxpose.xlu0.b32.cont [11/16] 0.0, 128
        %631 = vxpose.xlu0.b32.cont [12/16] 0.0, 128
        %632 = vxpose.xlu0.b32.cont [13/16] 0.0, 128
        %633 = vxpose.xlu0.b32.cont [14/16] 0.0, 128
        %634 = vxpose.xlu0.b32.cont [15/16] 0.0, 128
        %635 = vxpose.xlu0.b32.end [16/16] 0.0, 128
        %v636 = vpop.trf.xlu0
        %v637 = vpop.trf.xlu0
        %v638 = vpop.trf.xlu0
        %v639 = vpop.trf.xlu0
        %v640 = vpop.trf.xlu0
        %v641 = vpop.trf.xlu0
        %v642 = vpop.trf.xlu0
        %v643 = vpop.trf.xlu0
        %v644 = vpop.trf.xlu0
        %v645 = vpop.trf.xlu0
        %v646 = vpop.trf.xlu0
        %v647 = vpop.trf.xlu0
        %v648 = vpop.trf.xlu0
        %v649 = vpop.trf.xlu0
        %v650 = vpop.trf.xlu0
        %v651 = vpop.trf.xlu0
        %652 = vxpose.xlu0.b32.start [1/16] %v613, 128
        %653 = vxpose.xlu0.b32.cont [2/16] %v615, 128
        %654 = vxpose.xlu0.b32.cont [3/16] %v617, 128
        %655 = vxpose.xlu0.b32.cont [4/16] %v619, 128
        %656 = vxpose.xlu0.b32.cont [5/16] 0.0, 128
        %657 = vxpose.xlu0.b32.cont [6/16] 0.0, 128
        %658 = vxpose.xlu0.b32.cont [7/16] 0.0, 128
        %659 = vxpose.xlu0.b32.cont [8/16] 0.0, 128
        %660 = vxpose.xlu0.b32.cont [9/16] 0.0, 128
        %661 = vxpose.xlu0.b32.cont [10/16] 0.0, 128
        %662 = vxpose.xlu0.b32.cont [11/16] 0.0, 128
        %663 = vxpose.xlu0.b32.cont [12/16] 0.0, 128
        %664 = vxpose.xlu0.b32.cont [13/16] 0.0, 128
        %665 = vxpose.xlu0.b32.cont [14/16] 0.0, 128
        %666 = vxpose.xlu0.b32.cont [15/16] 0.0, 128
        %667 = vxpose.xlu0.b32.end [16/16] 0.0, 128
        %v668 = vpop.trf.xlu0
        %v669 = vpop.trf.xlu0
        %v670 = vpop.trf.xlu0
        %v671 = vpop.trf.xlu0
        %v672 = vpop.trf.xlu0
        %v673 = vpop.trf.xlu0
        %v674 = vpop.trf.xlu0
        %v675 = vpop.trf.xlu0
        %v676 = vpop.trf.xlu0
        %v677 = vpop.trf.xlu0
        %v678 = vpop.trf.xlu0
        %v679 = vpop.trf.xlu0
        %v680 = vpop.trf.xlu0
        %v681 = vpop.trf.xlu0
        %v682 = vpop.trf.xlu0
        %v683 = vpop.trf.xlu0
        %v684 = vld [vmem:[%s3] sm:$0xff]
        %v685 = vld [vmem:[%s3 + $0x8] sm:$0xff]
        %v686 = vld [vmem:[%s3 + $0x10] sm:$0xff]
        %v687 = vld [vmem:[%s3 + $0x18] sm:$0xff]
        %v688 = vld [vmem:[%s4] sm:$0x1]
        %v690 = vperm.slane %v688, 0
        %vm692 = vcmask 261120
        %v694 = vsel %vm692, %v636, 0
        %v697 = vsel %vm692, %v637, 0
        %v700 = vsel %vm692, %v638, 0
        %v703 = vsel %vm692, %v639, 0
        %v706 = vsel %vm692, %v640, 0
        %v709 = vsel %vm692, %v641, 0
        %v712 = vsel %vm692, %v642, 0
        %v715 = vsel %vm692, %v643, 0
        %v718 = vsel %vm692, %v644, 0
        %v721 = vsel %vm692, %v645, 0
        %v724 = vsel %vm692, %v646, 0
        %v727 = vsel %vm692, %v647, 0
        %v730 = vsel %vm692, %v648, 0
        %v733 = vsel %vm692, %v649, 0
        %v736 = vsel %vm692, %v650, 0
        %v739 = vsel %vm692, %v651, 0
        %v742 = vsel %vm692, %v668, 0
        %v745 = vsel %vm692, %v669, 0
        %v748 = vsel %vm692, %v670, 0
        %v751 = vsel %vm692, %v671, 0
        %v754 = vsel %vm692, %v672, 0
        %v757 = vsel %vm692, %v673, 0
        %v760 = vsel %vm692, %v674, 0
        %v763 = vsel %vm692, %v675, 0
        %v766 = vsel %vm692, %v676, 0
        %v769 = vsel %vm692, %v677, 0
        %v772 = vsel %vm692, %v678, 0
        %v775 = vsel %vm692, %v679, 0
        %v778 = vsel %vm692, %v680, 0
        %v781 = vsel %vm692, %v681, 0
        %v784 = vsel %vm692, %v682, 0
        %v787 = vsel %vm692, %v683, 0
        %789 = vmatpush.msra.mxu0 0.0
        %790 = vmatpush.msra.mxu0 0.0
        %791 = vmatpush.msra.mxu0 0.0
        %792 = vmatpush.msra.mxu0 0.0
        %793 = vmatpush.msra.mxu0 0.0
        %794 = vmatpush.msra.mxu0 0.0
        %795 = vmatpush.msra.mxu0 0.0
        %796 = vmatpush.msra.mxu0 0.0
        %797 = vmatpush.msra.mxu0 0.0
        %798 = vmatpush.msra.mxu0 0.0
        %799 = vmatpush.msra.mxu0 0.0
        %800 = vmatpush.msra.mxu0 0.0
        %801 = vmatpush.msra.mxu0 %v687
        %802 = vmatpush.msra.mxu0 %v686
        %803 = vmatpush.msra.mxu0 %v685
        %804 = vmatpush.msra.mxu0 %v684
        %805 = vmatmul.f32.gmra.mxu0 %v694
        %v806 = vpop.f32.mrf.mxu0
        %v807 = vadd.f32 %v690, %v806
        %808 = vmatmul.f32.gmra.mxu0 %v697
        %v809 = vpop.f32.mrf.mxu0
        %v810 = vadd.f32 %v690, %v809
        %811 = vmatmul.f32.gmra.mxu0 %v700
        %v812 = vpop.f32.mrf.mxu0
        %v813 = vadd.f32 %v690, %v812
        %814 = vmatmul.f32.gmra.mxu0 %v703
        %v815 = vpop.f32.mrf.mxu0
        %v816 = vadd.f32 %v690, %v815
        %817 = vmatmul.f32.gmra.mxu0 %v706
        %v818 = vpop.f32.mrf.mxu0
        %v819 = vadd.f32 %v690, %v818
        %820 = vmatmul.f32.gmra.mxu0 %v709
        %v821 = vpop.f32.mrf.mxu0
        %v822 = vadd.f32 %v690, %v821
        %823 = vmatmul.f32.gmra.mxu0 %v712
        %v824 = vpop.f32.mrf.mxu0
        %v825 = vadd.f32 %v690, %v824
        %826 = vmatmul.f32.gmra.mxu0 %v715
        %v827 = vpop.f32.mrf.mxu0
        %v828 = vadd.f32 %v690, %v827
        %829 = vmatmul.f32.gmra.mxu0 %v718
        %v830 = vpop.f32.mrf.mxu0
        %v831 = vadd.f32 %v690, %v830
        %832 = vmatmul.f32.gmra.mxu0 %v721
        %v833 = vpop.f32.mrf.mxu0
        %v834 = vadd.f32 %v690, %v833
        %835 = vmatmul.f32.gmra.mxu0 %v724
        %v836 = vpop.f32.mrf.mxu0
        %v837 = vadd.f32 %v690, %v836
        %838 = vmatmul.f32.gmra.mxu0 %v727
        %v839 = vpop.f32.mrf.mxu0
        %v840 = vadd.f32 %v690, %v839
        %841 = vmatmul.f32.gmra.mxu0 %v730
        %v842 = vpop.f32.mrf.mxu0
        %v843 = vadd.f32 %v690, %v842
        %844 = vmatmul.f32.gmra.mxu0 %v733
        %v845 = vpop.f32.mrf.mxu0
        %v846 = vadd.f32 %v690, %v845
        %847 = vmatmul.f32.gmra.mxu0 %v736
        %v848 = vpop.f32.mrf.mxu0
        %v849 = vadd.f32 %v690, %v848
        %850 = vmatmul.f32.gmra.mxu0 %v739
        %v851 = vpop.f32.mrf.mxu0
        %v852 = vadd.f32 %v690, %v851
        %853 = vmatmul.f32.gmra.mxu0 %v742
        %v854 = vpop.f32.mrf.mxu0
        %v855 = vadd.f32 %v690, %v854
        %856 = vmatmul.f32.gmra.mxu0 %v745
        %v857 = vpop.f32.mrf.mxu0
        %v858 = vadd.f32 %v690, %v857
        %859 = vmatmul.f32.gmra.mxu0 %v748
        %v860 = vpop.f32.mrf.mxu0
        %v861 = vadd.f32 %v690, %v860
        %862 = vmatmul.f32.gmra.mxu0 %v751
        %v863 = vpop.f32.mrf.mxu0
        %v864 = vadd.f32 %v690, %v863
        %865 = vmatmul.f32.gmra.mxu0 %v754
        %v866 = vpop.f32.mrf.mxu0
        %v867 = vadd.f32 %v690, %v866
        %868 = vmatmul.f32.gmra.mxu0 %v757
        %v869 = vpop.f32.mrf.mxu0
        %v870 = vadd.f32 %v690, %v869
        %871 = vmatmul.f32.gmra.mxu0 %v760
        %v872 = vpop.f32.mrf.mxu0
        %v873 = vadd.f32 %v690, %v872
        %874 = vmatmul.f32.gmra.mxu0 %v763
        %v875 = vpop.f32.mrf.mxu0
        %v876 = vadd.f32 %v690, %v875
        %877 = vmatmul.f32.gmra.mxu0 %v766
        %v878 = vpop.f32.mrf.mxu0
        %v879 = vadd.f32 %v690, %v878
        %880 = vmatmul.f32.gmra.mxu0 %v769
        %v881 = vpop.f32.mrf.mxu0
        %v882 = vadd.f32 %v690, %v881
        %883 = vmatmul.f32.gmra.mxu0 %v772
        %v884 = vpop.f32.mrf.mxu0
        %v885 = vadd.f32 %v690, %v884
        %886 = vmatmul.f32.gmra.mxu0 %v775
        %v887 = vpop.f32.mrf.mxu0
        %v888 = vadd.f32 %v690, %v887
        %889 = vmatmul.f32.gmra.mxu0 %v778
        %v890 = vpop.f32.mrf.mxu0
        %v891 = vadd.f32 %v690, %v890
        %892 = vmatmul.f32.gmra.mxu0 %v781
        %v893 = vpop.f32.mrf.mxu0
        %v894 = vadd.f32 %v690, %v893
        %895 = vmatmul.f32.gmra.mxu0 %v784
        %v896 = vpop.f32.mrf.mxu0
        %v897 = vadd.f32 %v690, %v896
        %898 = vmatmul.f32.gmra.mxu0 %v787
        %v899 = vpop.f32.mrf.mxu0
        %v900 = vadd.f32 %v690, %v899
        %901 = vdwg.mxu0
        %v902 = vld [vmem:[%s5] sm:$0xff]
        %v903 = vld [vmem:[%s5 + $0x8] sm:$0xff]
        %v904 = vld [vmem:[%s5 + $0x10] sm:$0xff]
        %v905 = vld [vmem:[%s5 + $0x18] sm:$0xff]
        %v906 = vld [vmem:[%s6] sm:$0x1]
        %v908 = vperm.slane %v906, 0
        %910 = vmatpush.msra.mxu0 0.0
        %911 = vmatpush.msra.mxu0 0.0
        %912 = vmatpush.msra.mxu0 0.0
        %913 = vmatpush.msra.mxu0 0.0
        %914 = vmatpush.msra.mxu0 0.0
        %915 = vmatpush.msra.mxu0 0.0
        %916 = vmatpush.msra.mxu0 0.0
        %917 = vmatpush.msra.mxu0 0.0
        %918 = vmatpush.msra.mxu0 0.0
        %919 = vmatpush.msra.mxu0 0.0
        %920 = vmatpush.msra.mxu0 0.0
        %921 = vmatpush.msra.mxu0 0.0
        %922 = vmatpush.msra.mxu0 %v905
        %923 = vmatpush.msra.mxu0 %v904
        %924 = vmatpush.msra.mxu0 %v903
        %925 = vmatpush.msra.mxu0 %v902
        %926 = vmatmul.f32.gmra.mxu0 %v694
        %v927 = vpop.f32.mrf.mxu0
        %v928 = vadd.f32 %v908, %v927
        %929 = vmatmul.f32.gmra.mxu0 %v697
        %v930 = vpop.f32.mrf.mxu0
        %v931 = vadd.f32 %v908, %v930
        %932 = vmatmul.f32.gmra.mxu0 %v700
        %v933 = vpop.f32.mrf.mxu0
        %v934 = vadd.f32 %v908, %v933
        %935 = vmatmul.f32.gmra.mxu0 %v703
        %v936 = vpop.f32.mrf.mxu0
        %v937 = vadd.f32 %v908, %v936
        %938 = vmatmul.f32.gmra.mxu0 %v706
        %v939 = vpop.f32.mrf.mxu0
        %v940 = vadd.f32 %v908, %v939
        %941 = vmatmul.f32.gmra.mxu0 %v709
        %v942 = vpop.f32.mrf.mxu0
        %v943 = vadd.f32 %v908, %v942
        %944 = vmatmul.f32.gmra.mxu0 %v712
        %v945 = vpop.f32.mrf.mxu0
        %v946 = vadd.f32 %v908, %v945
        %947 = vmatmul.f32.gmra.mxu0 %v715
        %v948 = vpop.f32.mrf.mxu0
        %v949 = vadd.f32 %v908, %v948
        %950 = vmatmul.f32.gmra.mxu0 %v718
        %v951 = vpop.f32.mrf.mxu0
        %v952 = vadd.f32 %v908, %v951
        %953 = vmatmul.f32.gmra.mxu0 %v721
        %v954 = vpop.f32.mrf.mxu0
        %v955 = vadd.f32 %v908, %v954
        %956 = vmatmul.f32.gmra.mxu0 %v724
        %v957 = vpop.f32.mrf.mxu0
        %v958 = vadd.f32 %v908, %v957
        %959 = vmatmul.f32.gmra.mxu0 %v727
        %v960 = vpop.f32.mrf.mxu0
        %v961 = vadd.f32 %v908, %v960
        %962 = vmatmul.f32.gmra.mxu0 %v730
        %v963 = vpop.f32.mrf.mxu0
        %v964 = vadd.f32 %v908, %v963
        %965 = vmatmul.f32.gmra.mxu0 %v733
        %v966 = vpop.f32.mrf.mxu0
        %v967 = vadd.f32 %v908, %v966
        %968 = vmatmul.f32.gmra.mxu0 %v736
        %v969 = vpop.f32.mrf.mxu0
        %v970 = vadd.f32 %v908, %v969
        %971 = vmatmul.f32.gmra.mxu0 %v739
        %v972 = vpop.f32.mrf.mxu0
        %v973 = vadd.f32 %v908, %v972
        %974 = vmatmul.f32.gmra.mxu0 %v742
        %v975 = vpop.f32.mrf.mxu0
        %v976 = vadd.f32 %v908, %v975
        %977 = vmatmul.f32.gmra.mxu0 %v745
        %v978 = vpop.f32.mrf.mxu0
        %v979 = vadd.f32 %v908, %v978
        %980 = vmatmul.f32.gmra.mxu0 %v748
        %v981 = vpop.f32.mrf.mxu0
        %v982 = vadd.f32 %v908, %v981
        %983 = vmatmul.f32.gmra.mxu0 %v751
        %v984 = vpop.f32.mrf.mxu0
        %v985 = vadd.f32 %v908, %v984
        %986 = vmatmul.f32.gmra.mxu0 %v754
        %v987 = vpop.f32.mrf.mxu0
        %v988 = vadd.f32 %v908, %v987
        %989 = vmatmul.f32.gmra.mxu0 %v757
        %v990 = vpop.f32.mrf.mxu0
        %v991 = vadd.f32 %v908, %v990
        %992 = vmatmul.f32.gmra.mxu0 %v760
        %v993 = vpop.f32.mrf.mxu0
        %v994 = vadd.f32 %v908, %v993
        %995 = vmatmul.f32.gmra.mxu0 %v763
        %v996 = vpop.f32.mrf.mxu0
        %v997 = vadd.f32 %v908, %v996
        %998 = vmatmul.f32.gmra.mxu0 %v766
        %v999 = vpop.f32.mrf.mxu0
        %v1000 = vadd.f32 %v908, %v999
        %1001 = vmatmul.f32.gmra.mxu0 %v769
        %v1002 = vpop.f32.mrf.mxu0
        %v1003 = vadd.f32 %v908, %v1002
        %1004 = vmatmul.f32.gmra.mxu0 %v772
        %v1005 = vpop.f32.mrf.mxu0
        %v1006 = vadd.f32 %v908, %v1005
        %1007 = vmatmul.f32.gmra.mxu0 %v775
        %v1008 = vpop.f32.mrf.mxu0
        %v1009 = vadd.f32 %v908, %v1008
        %1010 = vmatmul.f32.gmra.mxu0 %v778
        %v1011 = vpop.f32.mrf.mxu0
        %v1012 = vadd.f32 %v908, %v1011
        %1013 = vmatmul.f32.gmra.mxu0 %v781
        %v1014 = vpop.f32.mrf.mxu0
        %v1015 = vadd.f32 %v908, %v1014
        %1016 = vmatmul.f32.gmra.mxu0 %v784
        %v1017 = vpop.f32.mrf.mxu0
        %v1018 = vadd.f32 %v908, %v1017
        %1019 = vmatmul.f32.gmra.mxu0 %v787
        %v1020 = vpop.f32.mrf.mxu0
        %v1021 = vadd.f32 %v908, %v1020
        %1022 = vdwg.mxu0
        %v1023 = vld [vmem:[#allocation5] sm:$0xff]
        %v1024 = vld [vmem:[#allocation5 + $0x8] sm:$0xff]
        %v1025 = vld [vmem:[#allocation5 + $0x10] sm:$0xff]
        %v1026 = vld [vmem:[#allocation5 + $0x18] sm:$0xff]
        %v1027 = vld [vmem:[%s8] sm:$0x1]
        %v1029 = vperm.slane %v1027, 0
        %1031 = vmatpush.msra.mxu0 0.0
        %1032 = vmatpush.msra.mxu0 0.0
        %1033 = vmatpush.msra.mxu0 0.0
        %1034 = vmatpush.msra.mxu0 0.0
        %1035 = vmatpush.msra.mxu0 0.0
        %1036 = vmatpush.msra.mxu0 0.0
        %1037 = vmatpush.msra.mxu0 0.0
        %1038 = vmatpush.msra.mxu0 0.0
        %1039 = vmatpush.msra.mxu0 0.0
        %1040 = vmatpush.msra.mxu0 0.0
        %1041 = vmatpush.msra.mxu0 0.0
        %1042 = vmatpush.msra.mxu0 0.0
        %1043 = vmatpush.msra.mxu0 %v1026
        %1044 = vmatpush.msra.mxu0 %v1025
        %1045 = vmatpush.msra.mxu0 %v1024
        %1046 = vmatpush.msra.mxu0 %v1023
        %1047 = vmatmul.f32.gmra.mxu0 %v694
        %v1048 = vpop.f32.mrf.mxu0
        %v1049 = vadd.f32 %v1029, %v1048
        %1050 = vmatmul.f32.gmra.mxu0 %v697
        %v1051 = vpop.f32.mrf.mxu0
        %v1052 = vadd.f32 %v1029, %v1051
        %1053 = vmatmul.f32.gmra.mxu0 %v700
        %v1054 = vpop.f32.mrf.mxu0
        %v1055 = vadd.f32 %v1029, %v1054
        %1056 = vmatmul.f32.gmra.mxu0 %v703
        %v1057 = vpop.f32.mrf.mxu0
        %v1058 = vadd.f32 %v1029, %v1057
        %1059 = vmatmul.f32.gmra.mxu0 %v706
        %v1060 = vpop.f32.mrf.mxu0
        %v1061 = vadd.f32 %v1029, %v1060
        %1062 = vmatmul.f32.gmra.mxu0 %v709
        %v1063 = vpop.f32.mrf.mxu0
        %v1064 = vadd.f32 %v1029, %v1063
        %1065 = vmatmul.f32.gmra.mxu0 %v712
        %v1066 = vpop.f32.mrf.mxu0
        %v1067 = vadd.f32 %v1029, %v1066
        %1068 = vmatmul.f32.gmra.mxu0 %v715
        %v1069 = vpop.f32.mrf.mxu0
        %v1070 = vadd.f32 %v1029, %v1069
        %1071 = vmatmul.f32.gmra.mxu0 %v718
        %v1072 = vpop.f32.mrf.mxu0
        %v1073 = vadd.f32 %v1029, %v1072
        %1074 = vmatmul.f32.gmra.mxu0 %v721
        %v1075 = vpop.f32.mrf.mxu0
        %v1076 = vadd.f32 %v1029, %v1075
        %1077 = vmatmul.f32.gmra.mxu0 %v724
        %v1078 = vpop.f32.mrf.mxu0
        %v1079 = vadd.f32 %v1029, %v1078
        %1080 = vmatmul.f32.gmra.mxu0 %v727
        %v1081 = vpop.f32.mrf.mxu0
        %v1082 = vadd.f32 %v1029, %v1081
        %1083 = vmatmul.f32.gmra.mxu0 %v730
        %v1084 = vpop.f32.mrf.mxu0
        %v1085 = vadd.f32 %v1029, %v1084
        %1086 = vmatmul.f32.gmra.mxu0 %v733
        %v1087 = vpop.f32.mrf.mxu0
        %v1088 = vadd.f32 %v1029, %v1087
        %1089 = vmatmul.f32.gmra.mxu0 %v736
        %v1090 = vpop.f32.mrf.mxu0
        %v1091 = vadd.f32 %v1029, %v1090
        %1092 = vmatmul.f32.gmra.mxu0 %v739
        %v1093 = vpop.f32.mrf.mxu0
        %v1094 = vadd.f32 %v1029, %v1093
        %1095 = vmatmul.f32.gmra.mxu0 %v742
        %v1096 = vpop.f32.mrf.mxu0
        %v1097 = vadd.f32 %v1029, %v1096
        %1098 = vmatmul.f32.gmra.mxu0 %v745
        %v1099 = vpop.f32.mrf.mxu0
        %v1100 = vadd.f32 %v1029, %v1099
        %1101 = vmatmul.f32.gmra.mxu0 %v748
        %v1102 = vpop.f32.mrf.mxu0
        %v1103 = vadd.f32 %v1029, %v1102
        %1104 = vmatmul.f32.gmra.mxu0 %v751
        %v1105 = vpop.f32.mrf.mxu0
        %v1106 = vadd.f32 %v1029, %v1105
        %1107 = vmatmul.f32.gmra.mxu0 %v754
        %v1108 = vpop.f32.mrf.mxu0
        %v1109 = vadd.f32 %v1029, %v1108
        %1110 = vmatmul.f32.gmra.mxu0 %v757
        %v1111 = vpop.f32.mrf.mxu0
        %v1112 = vadd.f32 %v1029, %v1111
        %1113 = vmatmul.f32.gmra.mxu0 %v760
        %v1114 = vpop.f32.mrf.mxu0
        %v1115 = vadd.f32 %v1029, %v1114
        %1116 = vmatmul.f32.gmra.mxu0 %v763
        %v1117 = vpop.f32.mrf.mxu0
        %v1118 = vadd.f32 %v1029, %v1117
        %1119 = vmatmul.f32.gmra.mxu0 %v766
        %v1120 = vpop.f32.mrf.mxu0
        %v1121 = vadd.f32 %v1029, %v1120
        %1122 = vmatmul.f32.gmra.mxu0 %v769
        %v1123 = vpop.f32.mrf.mxu0
        %v1124 = vadd.f32 %v1029, %v1123
        %1125 = vmatmul.f32.gmra.mxu0 %v772
        %v1126 = vpop.f32.mrf.mxu0
        %v1127 = vadd.f32 %v1029, %v1126
        %1128 = vmatmul.f32.gmra.mxu0 %v775
        %v1129 = vpop.f32.mrf.mxu0
        %v1130 = vadd.f32 %v1029, %v1129
        %1131 = vmatmul.f32.gmra.mxu0 %v778
        %v1132 = vpop.f32.mrf.mxu0
        %v1133 = vadd.f32 %v1029, %v1132
        %1134 = vmatmul.f32.gmra.mxu0 %v781
        %v1135 = vpop.f32.mrf.mxu0
        %v1136 = vadd.f32 %v1029, %v1135
        %1137 = vmatmul.f32.gmra.mxu0 %v784
        %v1138 = vpop.f32.mrf.mxu0
        %v1139 = vadd.f32 %v1029, %v1138
        %1140 = vmatmul.f32.gmra.mxu0 %v787
        %v1141 = vpop.f32.mrf.mxu0
        %v1142 = vadd.f32 %v1029, %v1141
        %1143 = vdwg.mxu0
        %v1145 = vsel %vm692, %v807, 0
        %v1148 = vsel %vm692, %v810, 0
        %v1151 = vsel %vm692, %v813, 0
        %v1154 = vsel %vm692, %v816, 0
        %v1157 = vsel %vm692, %v819, 0
        %v1160 = vsel %vm692, %v822, 0
        %v1163 = vsel %vm692, %v825, 0
        %v1166 = vsel %vm692, %v828, 0
        %v1169 = vsel %vm692, %v831, 0
        %v1172 = vsel %vm692, %v834, 0
        %v1175 = vsel %vm692, %v837, 0
        %v1178 = vsel %vm692, %v840, 0
        %v1181 = vsel %vm692, %v843, 0
        %v1184 = vsel %vm692, %v846, 0
        %v1187 = vsel %vm692, %v849, 0
        %v1190 = vsel %vm692, %v852, 0
        %v1193 = vsel %vm692, %v855, 0
        %v1196 = vsel %vm692, %v858, 0
        %v1199 = vsel %vm692, %v861, 0
        %v1202 = vsel %vm692, %v864, 0
        %v1205 = vsel %vm692, %v867, 0
        %v1208 = vsel %vm692, %v870, 0
        %v1211 = vsel %vm692, %v873, 0
        %v1214 = vsel %vm692, %v876, 0
        %v1217 = vsel %vm692, %v879, 0
        %v1220 = vsel %vm692, %v882, 0
        %v1223 = vsel %vm692, %v885, 0
        %v1226 = vsel %vm692, %v888, 0
        %v1229 = vsel %vm692, %v891, 0
        %v1232 = vsel %vm692, %v894, 0
        %v1235 = vsel %vm692, %v897, 0
        %v1238 = vsel %vm692, %v900, 0
        %v1241 = vsel %vm692, %v928, 0
        %v1244 = vsel %vm692, %v931, 0
        %v1247 = vsel %vm692, %v934, 0
        %v1250 = vsel %vm692, %v937, 0
        %v1253 = vsel %vm692, %v940, 0
        %v1256 = vsel %vm692, %v943, 0
        %v1259 = vsel %vm692, %v946, 0
        %v1262 = vsel %vm692, %v949, 0
        %v1265 = vsel %vm692, %v952, 0
        %v1268 = vsel %vm692, %v955, 0
        %v1271 = vsel %vm692, %v958, 0
        %v1274 = vsel %vm692, %v961, 0
        %v1277 = vsel %vm692, %v964, 0
        %v1280 = vsel %vm692, %v967, 0
        %v1283 = vsel %vm692, %v970, 0
        %v1286 = vsel %vm692, %v973, 0
        %v1289 = vsel %vm692, %v976, 0
        %v1292 = vsel %vm692, %v979, 0
        %v1295 = vsel %vm692, %v982, 0
        %v1298 = vsel %vm692, %v985, 0
        %v1301 = vsel %vm692, %v988, 0
        %v1304 = vsel %vm692, %v991, 0
        %v1307 = vsel %vm692, %v994, 0
        %v1310 = vsel %vm692, %v997, 0
        %v1313 = vsel %vm692, %v1000, 0
        %v1316 = vsel %vm692, %v1003, 0
        %v1319 = vsel %vm692, %v1006, 0
        %v1322 = vsel %vm692, %v1009, 0
        %v1325 = vsel %vm692, %v1012, 0
        %v1328 = vsel %vm692, %v1015, 0
        %v1331 = vsel %vm692, %v1018, 0
        %v1334 = vsel %vm692, %v1021, 0
        %1336 = vmatpush.xpose.msra.mxu0 %v1286
        %1337 = vmatpush.xpose.msra.mxu0 %v1283
        %1338 = vmatpush.xpose.msra.mxu0 %v1280
        %1339 = vmatpush.xpose.msra.mxu0 %v1277
        %1340 = vmatpush.xpose.msra.mxu0 %v1274
        %1341 = vmatpush.xpose.msra.mxu0 %v1271
        %1342 = vmatpush.xpose.msra.mxu0 %v1268
        %1343 = vmatpush.xpose.msra.mxu0 %v1265
        %1344 = vmatpush.xpose.msra.mxu0 %v1262
        %1345 = vmatpush.xpose.msra.mxu0 %v1259
        %1346 = vmatpush.xpose.msra.mxu0 %v1256
        %1347 = vmatpush.xpose.msra.mxu0 %v1253
        %1348 = vmatpush.xpose.msra.mxu0 %v1250
        %1349 = vmatpush.xpose.msra.mxu0 %v1247
        %1350 = vmatpush.xpose.msra.mxu0 %v1244
        %1351 = vmatpush.xpose.msra.mxu0 %v1241
        %1352 = vmatmul.f32.gmra.mxu0 %v1145
        %v1353 = vpop.f32.mrf.mxu0
        %v1354 = vadd.f32 0.0, %v1353
        %1355 = vmatmul.f32.gmra.mxu0 %v1148
        %v1356 = vpop.f32.mrf.mxu0
        %v1357 = vadd.f32 0.0, %v1356
        %1358 = vmatmul.f32.gmra.mxu0 %v1151
        %v1359 = vpop.f32.mrf.mxu0
        %v1360 = vadd.f32 0.0, %v1359
        %1361 = vmatmul.f32.gmra.mxu0 %v1154
        %v1362 = vpop.f32.mrf.mxu0
        %v1363 = vadd.f32 0.0, %v1362
        %1364 = vmatmul.f32.gmra.mxu0 %v1157
        %v1365 = vpop.f32.mrf.mxu0
        %v1366 = vadd.f32 0.0, %v1365
        %1367 = vmatmul.f32.gmra.mxu0 %v1160
        %v1368 = vpop.f32.mrf.mxu0
        %v1369 = vadd.f32 0.0, %v1368
        %1370 = vmatmul.f32.gmra.mxu0 %v1163
        %v1371 = vpop.f32.mrf.mxu0
        %v1372 = vadd.f32 0.0, %v1371
        %1373 = vmatmul.f32.gmra.mxu0 %v1166
        %v1374 = vpop.f32.mrf.mxu0
        %v1375 = vadd.f32 0.0, %v1374
        %1376 = vmatmul.f32.gmra.mxu0 %v1169
        %v1377 = vpop.f32.mrf.mxu0
        %v1378 = vadd.f32 0.0, %v1377
        %1379 = vmatmul.f32.gmra.mxu0 %v1172
        %v1380 = vpop.f32.mrf.mxu0
        %v1381 = vadd.f32 0.0, %v1380
        %1382 = vmatmul.f32.gmra.mxu0 %v1175
        %v1383 = vpop.f32.mrf.mxu0
        %v1384 = vadd.f32 0.0, %v1383
        %1385 = vmatmul.f32.gmra.mxu0 %v1178
        %v1386 = vpop.f32.mrf.mxu0
        %v1387 = vadd.f32 0.0, %v1386
        %1388 = vmatmul.f32.gmra.mxu0 %v1181
        %v1389 = vpop.f32.mrf.mxu0
        %v1390 = vadd.f32 0.0, %v1389
        %1391 = vmatmul.f32.gmra.mxu0 %v1184
        %v1392 = vpop.f32.mrf.mxu0
        %v1393 = vadd.f32 0.0, %v1392
        %1394 = vmatmul.f32.gmra.mxu0 %v1187
        %v1395 = vpop.f32.mrf.mxu0
        %v1396 = vadd.f32 0.0, %v1395
        %1397 = vmatmul.f32.gmra.mxu0 %v1190
        %v1398 = vpop.f32.mrf.mxu0
        %v1399 = vadd.f32 0.0, %v1398
        %1400 = vmatmul.f32.gmra.mxu0 %v1193
        %v1401 = vpop.f32.mrf.mxu0
        %v1402 = vadd.f32 0.0, %v1401
        %1403 = vmatmul.f32.gmra.mxu0 %v1196
        %v1404 = vpop.f32.mrf.mxu0
        %v1405 = vadd.f32 0.0, %v1404
        %1406 = vmatmul.f32.gmra.mxu0 %v1199
        %v1407 = vpop.f32.mrf.mxu0
        %v1408 = vadd.f32 0.0, %v1407
        %1409 = vmatmul.f32.gmra.mxu0 %v1202
        %v1410 = vpop.f32.mrf.mxu0
        %v1411 = vadd.f32 0.0, %v1410
        %1412 = vmatmul.f32.gmra.mxu0 %v1205
        %v1413 = vpop.f32.mrf.mxu0
        %v1414 = vadd.f32 0.0, %v1413
        %1415 = vmatmul.f32.gmra.mxu0 %v1208
        %v1416 = vpop.f32.mrf.mxu0
        %v1417 = vadd.f32 0.0, %v1416
        %1418 = vmatmul.f32.gmra.mxu0 %v1211
        %v1419 = vpop.f32.mrf.mxu0
        %v1420 = vadd.f32 0.0, %v1419
        %1421 = vmatmul.f32.gmra.mxu0 %v1214
        %v1422 = vpop.f32.mrf.mxu0
        %v1423 = vadd.f32 0.0, %v1422
        %1424 = vmatmul.f32.gmra.mxu0 %v1217
        %v1425 = vpop.f32.mrf.mxu0
        %v1426 = vadd.f32 0.0, %v1425
        %1427 = vmatmul.f32.gmra.mxu0 %v1220
        %v1428 = vpop.f32.mrf.mxu0
        %v1429 = vadd.f32 0.0, %v1428
        %1430 = vmatmul.f32.gmra.mxu0 %v1223
        %v1431 = vpop.f32.mrf.mxu0
        %v1432 = vadd.f32 0.0, %v1431
        %1433 = vmatmul.f32.gmra.mxu0 %v1226
        %v1434 = vpop.f32.mrf.mxu0
        %v1435 = vadd.f32 0.0, %v1434
        %1436 = vmatmul.f32.gmra.mxu0 %v1229
        %v1437 = vpop.f32.mrf.mxu0
        %v1438 = vadd.f32 0.0, %v1437
        %1439 = vmatmul.f32.gmra.mxu0 %v1232
        %v1440 = vpop.f32.mrf.mxu0
        %v1441 = vadd.f32 0.0, %v1440
        %1442 = vmatmul.f32.gmra.mxu0 %v1235
        %v1443 = vpop.f32.mrf.mxu0
        %v1444 = vadd.f32 0.0, %v1443
        %1445 = vmatmul.f32.gmra.mxu0 %v1238
        %v1446 = vpop.f32.mrf.mxu0
        %v1447 = vadd.f32 0.0, %v1446
        %1448 = vdwg.mxu0
        %1449 = vmatpush.xpose.msra.mxu0 %v1334
        %1450 = vmatpush.xpose.msra.mxu0 %v1331
        %1451 = vmatpush.xpose.msra.mxu0 %v1328
        %1452 = vmatpush.xpose.msra.mxu0 %v1325
        %1453 = vmatpush.xpose.msra.mxu0 %v1322
        %1454 = vmatpush.xpose.msra.mxu0 %v1319
        %1455 = vmatpush.xpose.msra.mxu0 %v1316
        %1456 = vmatpush.xpose.msra.mxu0 %v1313
        %1457 = vmatpush.xpose.msra.mxu0 %v1310
        %1458 = vmatpush.xpose.msra.mxu0 %v1307
        %1459 = vmatpush.xpose.msra.mxu0 %v1304
        %1460 = vmatpush.xpose.msra.mxu0 %v1301
        %1461 = vmatpush.xpose.msra.mxu0 %v1298
        %1462 = vmatpush.xpose.msra.mxu0 %v1295
        %1463 = vmatpush.xpose.msra.mxu0 %v1292
        %1464 = vmatpush.xpose.msra.mxu0 %v1289
        %1465 = vmatmul.f32.gmra.mxu0 %v1145
        %v1466 = vpop.f32.mrf.mxu0
        %v1467 = vadd.f32 0.0, %v1466
        %1468 = vmatmul.f32.gmra.mxu0 %v1148
        %v1469 = vpop.f32.mrf.mxu0
        %v1470 = vadd.f32 0.0, %v1469
        %1471 = vmatmul.f32.gmra.mxu0 %v1151
        %v1472 = vpop.f32.mrf.mxu0
        %v1473 = vadd.f32 0.0, %v1472
        %1474 = vmatmul.f32.gmra.mxu0 %v1154
        %v1475 = vpop.f32.mrf.mxu0
        %v1476 = vadd.f32 0.0, %v1475
        %1477 = vmatmul.f32.gmra.mxu0 %v1157
        %v1478 = vpop.f32.mrf.mxu0
        %v1479 = vadd.f32 0.0, %v1478
        %1480 = vmatmul.f32.gmra.mxu0 %v1160
        %v1481 = vpop.f32.mrf.mxu0
        %v1482 = vadd.f32 0.0, %v1481
        %1483 = vmatmul.f32.gmra.mxu0 %v1163
        %v1484 = vpop.f32.mrf.mxu0
        %v1485 = vadd.f32 0.0, %v1484
        %1486 = vmatmul.f32.gmra.mxu0 %v1166
        %v1487 = vpop.f32.mrf.mxu0
        %v1488 = vadd.f32 0.0, %v1487
        %1489 = vmatmul.f32.gmra.mxu0 %v1169
        %v1490 = vpop.f32.mrf.mxu0
        %v1491 = vadd.f32 0.0, %v1490
        %1492 = vmatmul.f32.gmra.mxu0 %v1172
        %v1493 = vpop.f32.mrf.mxu0
        %v1494 = vadd.f32 0.0, %v1493
        %1495 = vmatmul.f32.gmra.mxu0 %v1175
        %v1496 = vpop.f32.mrf.mxu0
        %v1497 = vadd.f32 0.0, %v1496
        %1498 = vmatmul.f32.gmra.mxu0 %v1178
        %v1499 = vpop.f32.mrf.mxu0
        %v1500 = vadd.f32 0.0, %v1499
        %1501 = vmatmul.f32.gmra.mxu0 %v1181
        %v1502 = vpop.f32.mrf.mxu0
        %v1503 = vadd.f32 0.0, %v1502
        %1504 = vmatmul.f32.gmra.mxu0 %v1184
        %v1505 = vpop.f32.mrf.mxu0
        %v1506 = vadd.f32 0.0, %v1505
        %1507 = vmatmul.f32.gmra.mxu0 %v1187
        %v1508 = vpop.f32.mrf.mxu0
        %v1509 = vadd.f32 0.0, %v1508
        %1510 = vmatmul.f32.gmra.mxu0 %v1190
        %v1511 = vpop.f32.mrf.mxu0
        %v1512 = vadd.f32 0.0, %v1511
        %1513 = vmatmul.f32.gmra.mxu0 %v1193
        %v1514 = vpop.f32.mrf.mxu0
        %v1515 = vadd.f32 0.0, %v1514
        %1516 = vmatmul.f32.gmra.mxu0 %v1196
        %v1517 = vpop.f32.mrf.mxu0
        %v1518 = vadd.f32 0.0, %v1517
        %1519 = vmatmul.f32.gmra.mxu0 %v1199
        %v1520 = vpop.f32.mrf.mxu0
        %v1521 = vadd.f32 0.0, %v1520
        %1522 = vmatmul.f32.gmra.mxu0 %v1202
        %v1523 = vpop.f32.mrf.mxu0
        %v1524 = vadd.f32 0.0, %v1523
        %1525 = vmatmul.f32.gmra.mxu0 %v1205
        %v1526 = vpop.f32.mrf.mxu0
        %v1527 = vadd.f32 0.0, %v1526
        %1528 = vmatmul.f32.gmra.mxu0 %v1208
        %v1529 = vpop.f32.mrf.mxu0
        %v1530 = vadd.f32 0.0, %v1529
        %1531 = vmatmul.f32.gmra.mxu0 %v1211
        %v1532 = vpop.f32.mrf.mxu0
        %v1533 = vadd.f32 0.0, %v1532
        %1534 = vmatmul.f32.gmra.mxu0 %v1214
        %v1535 = vpop.f32.mrf.mxu0
        %v1536 = vadd.f32 0.0, %v1535
        %1537 = vmatmul.f32.gmra.mxu0 %v1217
        %v1538 = vpop.f32.mrf.mxu0
        %v1539 = vadd.f32 0.0, %v1538
        %1540 = vmatmul.f32.gmra.mxu0 %v1220
        %v1541 = vpop.f32.mrf.mxu0
        %v1542 = vadd.f32 0.0, %v1541
        %1543 = vmatmul.f32.gmra.mxu0 %v1223
        %v1544 = vpop.f32.mrf.mxu0
        %v1545 = vadd.f32 0.0, %v1544
        %1546 = vmatmul.f32.gmra.mxu0 %v1226
        %v1547 = vpop.f32.mrf.mxu0
        %v1548 = vadd.f32 0.0, %v1547
        %1549 = vmatmul.f32.gmra.mxu0 %v1229
        %v1550 = vpop.f32.mrf.mxu0
        %v1551 = vadd.f32 0.0, %v1550
        %1552 = vmatmul.f32.gmra.mxu0 %v1232
        %v1553 = vpop.f32.mrf.mxu0
        %v1554 = vadd.f32 0.0, %v1553
        %1555 = vmatmul.f32.gmra.mxu0 %v1235
        %v1556 = vpop.f32.mrf.mxu0
        %v1557 = vadd.f32 0.0, %v1556
        %1558 = vmatmul.f32.gmra.mxu0 %v1238
        %v1559 = vpop.f32.mrf.mxu0
        %v1560 = vadd.f32 0.0, %v1559
        %1561 = vdwg.mxu0
        %v1562 = vmul.f32 %v1354, 0.17677669
        %v1563 = vmul.f32 %v1467, 0.17677669
        %v1564 = vmul.f32 %v1357, 0.17677669
        %v1565 = vmul.f32 %v1470, 0.17677669
        %v1566 = vmul.f32 %v1360, 0.17677669
        %v1567 = vmul.f32 %v1473, 0.17677669
        %v1568 = vmul.f32 %v1363, 0.17677669
        %v1569 = vmul.f32 %v1476, 0.17677669
        %v1570 = vmul.f32 %v1366, 0.17677669
        %v1571 = vmul.f32 %v1479, 0.17677669
        %v1572 = vmul.f32 %v1369, 0.17677669
        %v1573 = vmul.f32 %v1482, 0.17677669
        %v1574 = vmul.f32 %v1372, 0.17677669
        %v1575 = vmul.f32 %v1485, 0.17677669
        %v1576 = vmul.f32 %v1375, 0.17677669
        %v1577 = vmul.f32 %v1488, 0.17677669
        %v1578 = vmul.f32 %v1378, 0.17677669
        %v1579 = vmul.f32 %v1491, 0.17677669
        %v1580 = vmul.f32 %v1381, 0.17677669
        %v1581 = vmul.f32 %v1494, 0.17677669
        %v1582 = vmul.f32 %v1384, 0.17677669
        %v1583 = vmul.f32 %v1497, 0.17677669
        %v1584 = vmul.f32 %v1387, 0.17677669
        %v1585 = vmul.f32 %v1500, 0.17677669
        %v1586 = vmul.f32 %v1390, 0.17677669
        %v1587 = vmul.f32 %v1503, 0.17677669
        %v1588 = vmul.f32 %v1393, 0.17677669
        %v1589 = vmul.f32 %v1506, 0.17677669
        %v1590 = vmul.f32 %v1396, 0.17677669
        %v1591 = vmul.f32 %v1509, 0.17677669
        %v1592 = vmul.f32 %v1399, 0.17677669
        %v1593 = vmul.f32 %v1512, 0.17677669
        %v1594 = vmul.f32 %v1402, 0.17677669
        %v1595 = vmul.f32 %v1515, 0.17677669
        %v1596 = vmul.f32 %v1405, 0.17677669
        %v1597 = vmul.f32 %v1518, 0.17677669
        %v1598 = vmul.f32 %v1408, 0.17677669
        %v1599 = vmul.f32 %v1521, 0.17677669
        %v1600 = vmul.f32 %v1411, 0.17677669
        %v1601 = vmul.f32 %v1524, 0.17677669
        %v1602 = vmul.f32 %v1414, 0.17677669
        %v1603 = vmul.f32 %v1527, 0.17677669
        %v1604 = vmul.f32 %v1417, 0.17677669
        %v1605 = vmul.f32 %v1530, 0.17677669
        %v1606 = vmul.f32 %v1420, 0.17677669
        %v1607 = vmul.f32 %v1533, 0.17677669
        %v1608 = vmul.f32 %v1423, 0.17677669
        %v1609 = vmul.f32 %v1536, 0.17677669
        %v1610 = vmul.f32 %v1426, 0.17677669
        %v1611 = vmul.f32 %v1539, 0.17677669
        %v1612 = vmul.f32 %v1429, 0.17677669
        %v1613 = vmul.f32 %v1542, 0.17677669
        %v1614 = vmul.f32 %v1432, 0.17677669
        %v1615 = vmul.f32 %v1545, 0.17677669
        %v1616 = vmul.f32 %v1435, 0.17677669
        %v1617 = vmul.f32 %v1548, 0.17677669
        %v1618 = vmul.f32 %v1438, 0.17677669
        %v1619 = vmul.f32 %v1551, 0.17677669
        %v1620 = vmul.f32 %v1441, 0.17677669
        %v1621 = vmul.f32 %v1554, 0.17677669
        %v1622 = vmul.f32 %v1444, 0.17677669
        %v1623 = vmul.f32 %v1557, 0.17677669
        %v1624 = vmul.f32 %v1447, 0.17677669
        %v1625 = vmul.f32 %v1560, 0.17677669
        %v1626 = vmax.f32 %v1562, %v1563
        %1627 = vmax.xlane.f32.xlu0 %v1626
        %v1628 = vpop.xlane.xlu0 %1627
        %v1629 = vmax.f32 %v1564, %v1565
        %1630 = vmax.xlane.f32.xlu0 %v1629
        %v1631 = vpop.xlane.xlu0 %1630
        %v1632 = vmax.f32 %v1566, %v1567
        %1633 = vmax.xlane.f32.xlu0 %v1632
        %v1634 = vpop.xlane.xlu0 %1633
        %v1635 = vmax.f32 %v1568, %v1569
        %1636 = vmax.xlane.f32.xlu0 %v1635
        %v1637 = vpop.xlane.xlu0 %1636
        %v1638 = vmax.f32 %v1570, %v1571
        %1639 = vmax.xlane.f32.xlu0 %v1638
        %v1640 = vpop.xlane.xlu0 %1639
        %v1641 = vmax.f32 %v1572, %v1573
        %1642 = vmax.xlane.f32.xlu0 %v1641
        %v1643 = vpop.xlane.xlu0 %1642
        %v1644 = vmax.f32 %v1574, %v1575
        %1645 = vmax.xlane.f32.xlu0 %v1644
        %v1646 = vpop.xlane.xlu0 %1645
        %v1647 = vmax.f32 %v1576, %v1577
        %1648 = vmax.xlane.f32.xlu0 %v1647
        %v1649 = vpop.xlane.xlu0 %1648
        %v1650 = vmax.f32 %v1578, %v1579
        %1651 = vmax.xlane.f32.xlu0 %v1650
        %v1652 = vpop.xlane.xlu0 %1651
        %v1653 = vmax.f32 %v1580, %v1581
        %1654 = vmax.xlane.f32.xlu0 %v1653
        %v1655 = vpop.xlane.xlu0 %1654
        %v1656 = vmax.f32 %v1582, %v1583
        %1657 = vmax.xlane.f32.xlu0 %v1656
        %v1658 = vpop.xlane.xlu0 %1657
        %v1659 = vmax.f32 %v1584, %v1585
        %1660 = vmax.xlane.f32.xlu0 %v1659
        %v1661 = vpop.xlane.xlu0 %1660
        %v1662 = vmax.f32 %v1586, %v1587
        %1663 = vmax.xlane.f32.xlu0 %v1662
        %v1664 = vpop.xlane.xlu0 %1663
        %v1665 = vmax.f32 %v1588, %v1589
        %1666 = vmax.xlane.f32.xlu0 %v1665
        %v1667 = vpop.xlane.xlu0 %1666
        %v1668 = vmax.f32 %v1590, %v1591
        %1669 = vmax.xlane.f32.xlu0 %v1668
        %v1670 = vpop.xlane.xlu0 %1669
        %v1671 = vmax.f32 %v1592, %v1593
        %1672 = vmax.xlane.f32.xlu0 %v1671
        %v1673 = vpop.xlane.xlu0 %1672
        %v1674 = vmax.f32 %v1594, %v1595
        %1675 = vmax.xlane.f32.xlu0 %v1674
        %v1676 = vpop.xlane.xlu0 %1675
        %v1677 = vmax.f32 %v1596, %v1597
        %1678 = vmax.xlane.f32.xlu0 %v1677
        %v1679 = vpop.xlane.xlu0 %1678
        %v1680 = vmax.f32 %v1598, %v1599
        %1681 = vmax.xlane.f32.xlu0 %v1680
        %v1682 = vpop.xlane.xlu0 %1681
        %v1683 = vmax.f32 %v1600, %v1601
        %1684 = vmax.xlane.f32.xlu0 %v1683
        %v1685 = vpop.xlane.xlu0 %1684
        %v1686 = vmax.f32 %v1602, %v1603
        %1687 = vmax.xlane.f32.xlu0 %v1686
        %v1688 = vpop.xlane.xlu0 %1687
        %v1689 = vmax.f32 %v1604, %v1605
        %1690 = vmax.xlane.f32.xlu0 %v1689
        %v1691 = vpop.xlane.xlu0 %1690
        %v1692 = vmax.f32 %v1606, %v1607
        %1693 = vmax.xlane.f32.xlu0 %v1692
        %v1694 = vpop.xlane.xlu0 %1693
        %v1695 = vmax.f32 %v1608, %v1609
        %1696 = vmax.xlane.f32.xlu0 %v1695
        %v1697 = vpop.xlane.xlu0 %1696
        %v1698 = vmax.f32 %v1610, %v1611
        %1699 = vmax.xlane.f32.xlu0 %v1698
        %v1700 = vpop.xlane.xlu0 %1699
        %v1701 = vmax.f32 %v1612, %v1613
        %1702 = vmax.xlane.f32.xlu0 %v1701
        %v1703 = vpop.xlane.xlu0 %1702
        %v1704 = vmax.f32 %v1614, %v1615
        %1705 = vmax.xlane.f32.xlu0 %v1704
        %v1706 = vpop.xlane.xlu0 %1705
        %v1707 = vmax.f32 %v1616, %v1617
        %1708 = vmax.xlane.f32.xlu0 %v1707
        %v1709 = vpop.xlane.xlu0 %1708
        %v1710 = vmax.f32 %v1618, %v1619
        %1711 = vmax.xlane.f32.xlu0 %v1710
        %v1712 = vpop.xlane.xlu0 %1711
        %v1713 = vmax.f32 %v1620, %v1621
        %1714 = vmax.xlane.f32.xlu0 %v1713
        %v1715 = vpop.xlane.xlu0 %1714
        %v1716 = vmax.f32 %v1622, %v1623
        %1717 = vmax.xlane.f32.xlu0 %v1716
        %v1718 = vpop.xlane.xlu0 %1717
        %v1719 = vmax.f32 %v1624, %v1625
        %1720 = vmax.xlane.f32.xlu0 %v1719
        %v1721 = vpop.xlane.xlu0 %1720
        %v1722 = vsub.f32 %v1562, %v1628
        %v1723 = vsub.f32 %v1563, %v1628
        %v1724 = vsub.f32 %v1564, %v1631
        %v1725 = vsub.f32 %v1565, %v1631
        %v1726 = vsub.f32 %v1566, %v1634
        %v1727 = vsub.f32 %v1567, %v1634
        %v1728 = vsub.f32 %v1568, %v1637
        %v1729 = vsub.f32 %v1569, %v1637
        %v1730 = vsub.f32 %v1570, %v1640
        %v1731 = vsub.f32 %v1571, %v1640
        %v1732 = vsub.f32 %v1572, %v1643
        %v1733 = vsub.f32 %v1573, %v1643
        %v1734 = vsub.f32 %v1574, %v1646
        %v1735 = vsub.f32 %v1575, %v1646
        %v1736 = vsub.f32 %v1576, %v1649
        %v1737 = vsub.f32 %v1577, %v1649
        %v1738 = vsub.f32 %v1578, %v1652
        %v1739 = vsub.f32 %v1579, %v1652
        %v1740 = vsub.f32 %v1580, %v1655
        %v1741 = vsub.f32 %v1581, %v1655
        %v1742 = vsub.f32 %v1582, %v1658
        %v1743 = vsub.f32 %v1583, %v1658
        %v1744 = vsub.f32 %v1584, %v1661
        %v1745 = vsub.f32 %v1585, %v1661
        %v1746 = vsub.f32 %v1586, %v1664
        %v1747 = vsub.f32 %v1587, %v1664
        %v1748 = vsub.f32 %v1588, %v1667
        %v1749 = vsub.f32 %v1589, %v1667
        %v1750 = vsub.f32 %v1590, %v1670
        %v1751 = vsub.f32 %v1591, %v1670
        %v1752 = vsub.f32 %v1592, %v1673
        %v1753 = vsub.f32 %v1593, %v1673
        %v1754 = vsub.f32 %v1594, %v1676
        %v1755 = vsub.f32 %v1595, %v1676
        %v1756 = vsub.f32 %v1596, %v1679
        %v1757 = vsub.f32 %v1597, %v1679
        %v1758 = vsub.f32 %v1598, %v1682
        %v1759 = vsub.f32 %v1599, %v1682
        %v1760 = vsub.f32 %v1600, %v1685
        %v1761 = vsub.f32 %v1601, %v1685
        %v1762 = vsub.f32 %v1602, %v1688
        %v1763 = vsub.f32 %v1603, %v1688
        %v1764 = vsub.f32 %v1604, %v1691
        %v1765 = vsub.f32 %v1605, %v1691
        %v1766 = vsub.f32 %v1606, %v1694
        %v1767 = vsub.f32 %v1607, %v1694
        %v1768 = vsub.f32 %v1608, %v1697
        %v1769 = vsub.f32 %v1609, %v1697
        %v1770 = vsub.f32 %v1610, %v1700
        %v1771 = vsub.f32 %v1611, %v1700
        %v1772 = vsub.f32 %v1612, %v1703
        %v1773 = vsub.f32 %v1613, %v1703
        %v1774 = vsub.f32 %v1614, %v1706
        %v1775 = vsub.f32 %v1615, %v1706
        %v1776 = vsub.f32 %v1616, %v1709
        %v1777 = vsub.f32 %v1617, %v1709
        %v1778 = vsub.f32 %v1618, %v1712
        %v1779 = vsub.f32 %v1619, %v1712
        %v1780 = vsub.f32 %v1620, %v1715
        %v1781 = vsub.f32 %v1621, %v1715
        %v1782 = vsub.f32 %v1622, %v1718
        %v1783 = vsub.f32 %v1623, %v1718
        %v1784 = vsub.f32 %v1624, %v1721
        %v1785 = vsub.f32 %v1625, %v1721
        %v1786 = vmul.f32 %v1722, 1.442695
        %v1787 = vpow.pop %v1786
        %v1788 = vmul.f32 %v1723, 1.442695
        %v1789 = vpow.pop %v1788
        %v1790 = vmul.f32 %v1724, 1.442695
        %v1791 = vpow.pop %v1790
        %v1792 = vmul.f32 %v1725, 1.442695
        %v1793 = vpow.pop %v1792
        %v1794 = vmul.f32 %v1726, 1.442695
        %v1795 = vpow.pop %v1794
        %v1796 = vmul.f32 %v1727, 1.442695
        %v1797 = vpow.pop %v1796
        %v1798 = vmul.f32 %v1728, 1.442695
        %v1799 = vpow.pop %v1798
        %v1800 = vmul.f32 %v1729, 1.442695
        %v1801 = vpow.pop %v1800
        %v1802 = vmul.f32 %v1730, 1.442695
        %v1803 = vpow.pop %v1802
        %v1804 = vmul.f32 %v1731, 1.442695
        %v1805 = vpow.pop %v1804
        %v1806 = vmul.f32 %v1732, 1.442695
        %v1807 = vpow.pop %v1806
        %v1808 = vmul.f32 %v1733, 1.442695
        %v1809 = vpow.pop %v1808
        %v1810 = vmul.f32 %v1734, 1.442695
        %v1811 = vpow.pop %v1810
        %v1812 = vmul.f32 %v1735, 1.442695
        %v1813 = vpow.pop %v1812
        %v1814 = vmul.f32 %v1736, 1.442695
        %v1815 = vpow.pop %v1814
        %v1816 = vmul.f32 %v1737, 1.442695
        %v1817 = vpow.pop %v1816
        %v1818 = vmul.f32 %v1738, 1.442695
        %v1819 = vpow.pop %v1818
        %v1820 = vmul.f32 %v1739, 1.442695
        %v1821 = vpow.pop %v1820
        %v1822 = vmul.f32 %v1740, 1.442695
        %v1823 = vpow.pop %v1822
        %v1824 = vmul.f32 %v1741, 1.442695
        %v1825 = vpow.pop %v1824
        %v1826 = vmul.f32 %v1742, 1.442695
        %v1827 = vpow.pop %v1826
        %v1828 = vmul.f32 %v1743, 1.442695
        %v1829 = vpow.pop %v1828
        %v1830 = vmul.f32 %v1744, 1.442695
        %v1831 = vpow.pop %v1830
        %v1832 = vmul.f32 %v1745, 1.442695
        %v1833 = vpow.pop %v1832
        %v1834 = vmul.f32 %v1746, 1.442695
        %v1835 = vpow.pop %v1834
        %v1836 = vmul.f32 %v1747, 1.442695
        %v1837 = vpow.pop %v1836
        %v1838 = vmul.f32 %v1748, 1.442695
        %v1839 = vpow.pop %v1838
        %v1840 = vmul.f32 %v1749, 1.442695
        %v1841 = vpow.pop %v1840
        %v1842 = vmul.f32 %v1750, 1.442695
        %v1843 = vpow.pop %v1842
        %v1844 = vmul.f32 %v1751, 1.442695
        %v1845 = vpow.pop %v1844
        %v1846 = vmul.f32 %v1752, 1.442695
        %v1847 = vpow.pop %v1846
        %v1848 = vmul.f32 %v1753, 1.442695
        %v1849 = vpow.pop %v1848
        %v1850 = vmul.f32 %v1754, 1.442695
        %v1851 = vpow.pop %v1850
        %v1852 = vmul.f32 %v1755, 1.442695
        %v1853 = vpow.pop %v1852
        %v1854 = vmul.f32 %v1756, 1.442695
        %v1855 = vpow.pop %v1854
        %v1856 = vmul.f32 %v1757, 1.442695
        %v1857 = vpow.pop %v1856
        %v1858 = vmul.f32 %v1758, 1.442695
        %v1859 = vpow.pop %v1858
        %v1860 = vmul.f32 %v1759, 1.442695
        %v1861 = vpow.pop %v1860
        %v1862 = vmul.f32 %v1760, 1.442695
        %v1863 = vpow.pop %v1862
        %v1864 = vmul.f32 %v1761, 1.442695
        %v1865 = vpow.pop %v1864
        %v1866 = vmul.f32 %v1762, 1.442695
        %v1867 = vpow.pop %v1866
        %v1868 = vmul.f32 %v1763, 1.442695
        %v1869 = vpow.pop %v1868
        %v1870 = vmul.f32 %v1764, 1.442695
        %v1871 = vpow.pop %v1870
        %v1872 = vmul.f32 %v1765, 1.442695
        %v1873 = vpow.pop %v1872
        %v1874 = vmul.f32 %v1766, 1.442695
        %v1875 = vpow.pop %v1874
        %v1876 = vmul.f32 %v1767, 1.442695
        %v1877 = vpow.pop %v1876
        %v1878 = vmul.f32 %v1768, 1.442695
        %v1879 = vpow.pop %v1878
        %v1880 = vmul.f32 %v1769, 1.442695
        %v1881 = vpow.pop %v1880
        %v1882 = vmul.f32 %v1770, 1.442695
        %v1883 = vpow.pop %v1882
        %v1884 = vmul.f32 %v1771, 1.442695
        %v1885 = vpow.pop %v1884
        %v1886 = vmul.f32 %v1772, 1.442695
        %v1887 = vpow.pop %v1886
        %v1888 = vmul.f32 %v1773, 1.442695
        %v1889 = vpow.pop %v1888
        %v1890 = vmul.f32 %v1774, 1.442695
        %v1891 = vpow.pop %v1890
        %v1892 = vmul.f32 %v1775, 1.442695
        %v1893 = vpow.pop %v1892
        %v1894 = vmul.f32 %v1776, 1.442695
        %v1895 = vpow.pop %v1894
        %v1896 = vmul.f32 %v1777, 1.442695
        %v1897 = vpow.pop %v1896
        %v1898 = vmul.f32 %v1778, 1.442695
        %v1899 = vpow.pop %v1898
        %v1900 = vmul.f32 %v1779, 1.442695
        %v1901 = vpow.pop %v1900
        %v1902 = vmul.f32 %v1780, 1.442695
        %v1903 = vpow.pop %v1902
        %v1904 = vmul.f32 %v1781, 1.442695
        %v1905 = vpow.pop %v1904
        %v1906 = vmul.f32 %v1782, 1.442695
        %v1907 = vpow.pop %v1906
        %v1908 = vmul.f32 %v1783, 1.442695
        %v1909 = vpow.pop %v1908
        %v1910 = vmul.f32 %v1784, 1.442695
        %v1911 = vpow.pop %v1910
        %v1912 = vmul.f32 %v1785, 1.442695
        %v1913 = vpow.pop %v1912
        %v1914 = vadd.f32 %v1787, %v1789
        %1915 = vadd.xlane.f32.xlu0 %v1914
        %v1916 = vpop.xlane.xlu0 %1915
        %v1917 = vadd.f32 %v1791, %v1793
        %1918 = vadd.xlane.f32.xlu0 %v1917
        %v1919 = vpop.xlane.xlu0 %1918
        %v1920 = vadd.f32 %v1795, %v1797
        %1921 = vadd.xlane.f32.xlu0 %v1920
        %v1922 = vpop.xlane.xlu0 %1921
        %v1923 = vadd.f32 %v1799, %v1801
        %1924 = vadd.xlane.f32.xlu0 %v1923
        %v1925 = vpop.xlane.xlu0 %1924
        %v1926 = vadd.f32 %v1803, %v1805
        %1927 = vadd.xlane.f32.xlu0 %v1926
        %v1928 = vpop.xlane.xlu0 %1927
        %v1929 = vadd.f32 %v1807, %v1809
        %1930 = vadd.xlane.f32.xlu0 %v1929
        %v1931 = vpop.xlane.xlu0 %1930
        %v1932 = vadd.f32 %v1811, %v1813
        %1933 = vadd.xlane.f32.xlu0 %v1932
        %v1934 = vpop.xlane.xlu0 %1933
        %v1935 = vadd.f32 %v1815, %v1817
        %1936 = vadd.xlane.f32.xlu0 %v1935
        %v1937 = vpop.xlane.xlu0 %1936
        %v1938 = vadd.f32 %v1819, %v1821
        %1939 = vadd.xlane.f32.xlu0 %v1938
        %v1940 = vpop.xlane.xlu0 %1939
        %v1941 = vadd.f32 %v1823, %v1825
        %1942 = vadd.xlane.f32.xlu0 %v1941
        %v1943 = vpop.xlane.xlu0 %1942
        %v1944 = vadd.f32 %v1827, %v1829
        %1945 = vadd.xlane.f32.xlu0 %v1944
        %v1946 = vpop.xlane.xlu0 %1945
        %v1947 = vadd.f32 %v1831, %v1833
        %1948 = vadd.xlane.f32.xlu0 %v1947
        %v1949 = vpop.xlane.xlu0 %1948
        %v1950 = vadd.f32 %v1835, %v1837
        %1951 = vadd.xlane.f32.xlu0 %v1950
        %v1952 = vpop.xlane.xlu0 %1951
        %v1953 = vadd.f32 %v1839, %v1841
        %1954 = vadd.xlane.f32.xlu0 %v1953
        %v1955 = vpop.xlane.xlu0 %1954
        %v1956 = vadd.f32 %v1843, %v1845
        %1957 = vadd.xlane.f32.xlu0 %v1956
        %v1958 = vpop.xlane.xlu0 %1957
        %v1959 = vadd.f32 %v1847, %v1849
        %1960 = vadd.xlane.f32.xlu0 %v1959
        %v1961 = vpop.xlane.xlu0 %1960
        %v1962 = vadd.f32 %v1851, %v1853
        %1963 = vadd.xlane.f32.xlu0 %v1962
        %v1964 = vpop.xlane.xlu0 %1963
        %v1965 = vadd.f32 %v1855, %v1857
        %1966 = vadd.xlane.f32.xlu0 %v1965
        %v1967 = vpop.xlane.xlu0 %1966
        %v1968 = vadd.f32 %v1859, %v1861
        %1969 = vadd.xlane.f32.xlu0 %v1968
        %v1970 = vpop.xlane.xlu0 %1969
        %v1971 = vadd.f32 %v1863, %v1865
        %1972 = vadd.xlane.f32.xlu0 %v1971
        %v1973 = vpop.xlane.xlu0 %1972
        %v1974 = vadd.f32 %v1867, %v1869
        %1975 = vadd.xlane.f32.xlu0 %v1974
        %v1976 = vpop.xlane.xlu0 %1975
        %v1977 = vadd.f32 %v1871, %v1873
        %1978 = vadd.xlane.f32.xlu0 %v1977
        %v1979 = vpop.xlane.xlu0 %1978
        %v1980 = vadd.f32 %v1875, %v1877
        %1981 = vadd.xlane.f32.xlu0 %v1980
        %v1982 = vpop.xlane.xlu0 %1981
        %v1983 = vadd.f32 %v1879, %v1881
        %1984 = vadd.xlane.f32.xlu0 %v1983
        %v1985 = vpop.xlane.xlu0 %1984
        %v1986 = vadd.f32 %v1883, %v1885
        %1987 = vadd.xlane.f32.xlu0 %v1986
        %v1988 = vpop.xlane.xlu0 %1987
        %v1989 = vadd.f32 %v1887, %v1889
        %1990 = vadd.xlane.f32.xlu0 %v1989
        %v1991 = vpop.xlane.xlu0 %1990
        %v1992 = vadd.f32 %v1891, %v1893
        %1993 = vadd.xlane.f32.xlu0 %v1992
        %v1994 = vpop.xlane.xlu0 %1993
        %v1995 = vadd.f32 %v1895, %v1897
        %1996 = vadd.xlane.f32.xlu0 %v1995
        %v1997 = vpop.xlane.xlu0 %1996
        %v1998 = vadd.f32 %v1899, %v1901
        %1999 = vadd.xlane.f32.xlu0 %v1998
        %v2000 = vpop.xlane.xlu0 %1999
        %v2001 = vadd.f32 %v1903, %v1905
        %2002 = vadd.xlane.f32.xlu0 %v2001
        %v2003 = vpop.xlane.xlu0 %2002
        %v2004 = vadd.f32 %v1907, %v1909
        %2005 = vadd.xlane.f32.xlu0 %v2004
        %v2006 = vpop.xlane.xlu0 %2005
        %v2007 = vadd.f32 %v1911, %v1913
        %2008 = vadd.xlane.f32.xlu0 %v2007
        %v2009 = vpop.xlane.xlu0 %2008
        %v2010 = vrcp.pop %v1916
        %v2011 = vmul.f32 %v1916, %v2010
        %v2012 = vsub.f32 1.0, %v2011
        %v2013 = vmul.f32 %v2010, %v2012
        %v2014 = vadd.f32 %v2010, %v2013
        %vm2015 = vweird.f32 %v1916
        %vm2016 = vweird.f32 %v2010
        %vm2017 = vmor %vm2015, %vm2016
        %v2018 = vsel %vm2017, %v2010, %v2014
        %v2019 = vand.u32 2147483647, %v1916
        %vm2020 = vcmp.eq.f32.partialorder %v2019, 8.507059e+37
        %v2021 = vand.u32 %v1916, 2147483648
        %v2022 = vor.u32 1.1754944e-38, %v2021
        %v2023 = vsel %vm2020, %v2022, %v2018
        %v2024 = vmul.f32 %v1787, %v2023
        %v2025 = vmul.f32 %v1789, %v2023
        %v2026 = vrcp.pop %v1919
        %v2027 = vmul.f32 %v1919, %v2026
        %v2028 = vsub.f32 1.0, %v2027
        %v2029 = vmul.f32 %v2026, %v2028
        %v2030 = vadd.f32 %v2026, %v2029
        %vm2031 = vweird.f32 %v1919
        %vm2032 = vweird.f32 %v2026
        %vm2033 = vmor %vm2031, %vm2032
        %v2034 = vsel %vm2033, %v2026, %v2030
        %v2035 = vand.u32 2147483647, %v1919
        %vm2036 = vcmp.eq.f32.partialorder %v2035, 8.507059e+37
        %v2037 = vand.u32 %v1919, 2147483648
        %v2038 = vor.u32 1.1754944e-38, %v2037
        %v2039 = vsel %vm2036, %v2038, %v2034
        %v2040 = vmul.f32 %v1791, %v2039
        %v2041 = vmul.f32 %v1793, %v2039
        %v2042 = vrcp.pop %v1922
        %v2043 = vmul.f32 %v1922, %v2042
        %v2044 = vsub.f32 1.0, %v2043
        %v2045 = vmul.f32 %v2042, %v2044
        %v2046 = vadd.f32 %v2042, %v2045
        %vm2047 = vweird.f32 %v1922
        %vm2048 = vweird.f32 %v2042
        %vm2049 = vmor %vm2047, %vm2048
        %v2050 = vsel %vm2049, %v2042, %v2046
        %v2051 = vand.u32 2147483647, %v1922
        %vm2052 = vcmp.eq.f32.partialorder %v2051, 8.507059e+37
        %v2053 = vand.u32 %v1922, 2147483648
        %v2054 = vor.u32 1.1754944e-38, %v2053
        %v2055 = vsel %vm2052, %v2054, %v2050
        %v2056 = vmul.f32 %v1795, %v2055
        %v2057 = vmul.f32 %v1797, %v2055
        %v2058 = vrcp.pop %v1925
        %v2059 = vmul.f32 %v1925, %v2058
        %v2060 = vsub.f32 1.0, %v2059
        %v2061 = vmul.f32 %v2058, %v2060
        %v2062 = vadd.f32 %v2058, %v2061
        %vm2063 = vweird.f32 %v1925
        %vm2064 = vweird.f32 %v2058
        %vm2065 = vmor %vm2063, %vm2064
        %v2066 = vsel %vm2065, %v2058, %v2062
        %v2067 = vand.u32 2147483647, %v1925
        %vm2068 = vcmp.eq.f32.partialorder %v2067, 8.507059e+37
        %v2069 = vand.u32 %v1925, 2147483648
        %v2070 = vor.u32 1.1754944e-38, %v2069
        %v2071 = vsel %vm2068, %v2070, %v2066
        %v2072 = vmul.f32 %v1799, %v2071
        %v2073 = vmul.f32 %v1801, %v2071
        %v2074 = vrcp.pop %v1928
        %v2075 = vmul.f32 %v1928, %v2074
        %v2076 = vsub.f32 1.0, %v2075
        %v2077 = vmul.f32 %v2074, %v2076
        %v2078 = vadd.f32 %v2074, %v2077
        %vm2079 = vweird.f32 %v1928
        %vm2080 = vweird.f32 %v2074
        %vm2081 = vmor %vm2079, %vm2080
        %v2082 = vsel %vm2081, %v2074, %v2078
        %v2083 = vand.u32 2147483647, %v1928
        %vm2084 = vcmp.eq.f32.partialorder %v2083, 8.507059e+37
        %v2085 = vand.u32 %v1928, 2147483648
        %v2086 = vor.u32 1.1754944e-38, %v2085
        %v2087 = vsel %vm2084, %v2086, %v2082
        %v2088 = vmul.f32 %v1803, %v2087
        %v2089 = vmul.f32 %v1805, %v2087
        %v2090 = vrcp.pop %v1931
        %v2091 = vmul.f32 %v1931, %v2090
        %v2092 = vsub.f32 1.0, %v2091
        %v2093 = vmul.f32 %v2090, %v2092
        %v2094 = vadd.f32 %v2090, %v2093
        %vm2095 = vweird.f32 %v1931
        %vm2096 = vweird.f32 %v2090
        %vm2097 = vmor %vm2095, %vm2096
        %v2098 = vsel %vm2097, %v2090, %v2094
        %v2099 = vand.u32 2147483647, %v1931
        %vm2100 = vcmp.eq.f32.partialorder %v2099, 8.507059e+37
        %v2101 = vand.u32 %v1931, 2147483648
        %v2102 = vor.u32 1.1754944e-38, %v2101
        %v2103 = vsel %vm2100, %v2102, %v2098
        %v2104 = vmul.f32 %v1807, %v2103
        %v2105 = vmul.f32 %v1809, %v2103
        %v2106 = vrcp.pop %v1934
        %v2107 = vmul.f32 %v1934, %v2106
        %v2108 = vsub.f32 1.0, %v2107
        %v2109 = vmul.f32 %v2106, %v2108
        %v2110 = vadd.f32 %v2106, %v2109
        %vm2111 = vweird.f32 %v1934
        %vm2112 = vweird.f32 %v2106
        %vm2113 = vmor %vm2111, %vm2112
        %v2114 = vsel %vm2113, %v2106, %v2110
        %v2115 = vand.u32 2147483647, %v1934
        %vm2116 = vcmp.eq.f32.partialorder %v2115, 8.507059e+37
        %v2117 = vand.u32 %v1934, 2147483648
        %v2118 = vor.u32 1.1754944e-38, %v2117
        %v2119 = vsel %vm2116, %v2118, %v2114
        %v2120 = vmul.f32 %v1811, %v2119
        %v2121 = vmul.f32 %v1813, %v2119
        %v2122 = vrcp.pop %v1937
        %v2123 = vmul.f32 %v1937, %v2122
        %v2124 = vsub.f32 1.0, %v2123
        %v2125 = vmul.f32 %v2122, %v2124
        %v2126 = vadd.f32 %v2122, %v2125
        %vm2127 = vweird.f32 %v1937
        %vm2128 = vweird.f32 %v2122
        %vm2129 = vmor %vm2127, %vm2128
        %v2130 = vsel %vm2129, %v2122, %v2126
        %v2131 = vand.u32 2147483647, %v1937
        %vm2132 = vcmp.eq.f32.partialorder %v2131, 8.507059e+37
        %v2133 = vand.u32 %v1937, 2147483648
        %v2134 = vor.u32 1.1754944e-38, %v2133
        %v2135 = vsel %vm2132, %v2134, %v2130
        %v2136 = vmul.f32 %v1815, %v2135
        %v2137 = vmul.f32 %v1817, %v2135
        %v2138 = vrcp.pop %v1940
        %v2139 = vmul.f32 %v1940, %v2138
        %v2140 = vsub.f32 1.0, %v2139
        %v2141 = vmul.f32 %v2138, %v2140
        %v2142 = vadd.f32 %v2138, %v2141
        %vm2143 = vweird.f32 %v1940
        %vm2144 = vweird.f32 %v2138
        %vm2145 = vmor %vm2143, %vm2144
        %v2146 = vsel %vm2145, %v2138, %v2142
        %v2147 = vand.u32 2147483647, %v1940
        %vm2148 = vcmp.eq.f32.partialorder %v2147, 8.507059e+37
        %v2149 = vand.u32 %v1940, 2147483648
        %v2150 = vor.u32 1.1754944e-38, %v2149
        %v2151 = vsel %vm2148, %v2150, %v2146
        %v2152 = vmul.f32 %v1819, %v2151
        %v2153 = vmul.f32 %v1821, %v2151
        %v2154 = vrcp.pop %v1943
        %v2155 = vmul.f32 %v1943, %v2154
        %v2156 = vsub.f32 1.0, %v2155
        %v2157 = vmul.f32 %v2154, %v2156
        %v2158 = vadd.f32 %v2154, %v2157
        %vm2159 = vweird.f32 %v1943
        %vm2160 = vweird.f32 %v2154
        %vm2161 = vmor %vm2159, %vm2160
        %v2162 = vsel %vm2161, %v2154, %v2158
        %v2163 = vand.u32 2147483647, %v1943
        %vm2164 = vcmp.eq.f32.partialorder %v2163, 8.507059e+37
        %v2165 = vand.u32 %v1943, 2147483648
        %v2166 = vor.u32 1.1754944e-38, %v2165
        %v2167 = vsel %vm2164, %v2166, %v2162
        %v2168 = vmul.f32 %v1823, %v2167
        %v2169 = vmul.f32 %v1825, %v2167
        %v2170 = vrcp.pop %v1946
        %v2171 = vmul.f32 %v1946, %v2170
        %v2172 = vsub.f32 1.0, %v2171
        %v2173 = vmul.f32 %v2170, %v2172
        %v2174 = vadd.f32 %v2170, %v2173
        %vm2175 = vweird.f32 %v1946
        %vm2176 = vweird.f32 %v2170
        %vm2177 = vmor %vm2175, %vm2176
        %v2178 = vsel %vm2177, %v2170, %v2174
        %v2179 = vand.u32 2147483647, %v1946
        %vm2180 = vcmp.eq.f32.partialorder %v2179, 8.507059e+37
        %v2181 = vand.u32 %v1946, 2147483648
        %v2182 = vor.u32 1.1754944e-38, %v2181
        %v2183 = vsel %vm2180, %v2182, %v2178
        %v2184 = vmul.f32 %v1827, %v2183
        %v2185 = vmul.f32 %v1829, %v2183
        %v2186 = vrcp.pop %v1949
        %v2187 = vmul.f32 %v1949, %v2186
        %v2188 = vsub.f32 1.0, %v2187
        %v2189 = vmul.f32 %v2186, %v2188
        %v2190 = vadd.f32 %v2186, %v2189
        %vm2191 = vweird.f32 %v1949
        %vm2192 = vweird.f32 %v2186
        %vm2193 = vmor %vm2191, %vm2192
        %v2194 = vsel %vm2193, %v2186, %v2190
        %v2195 = vand.u32 2147483647, %v1949
        %vm2196 = vcmp.eq.f32.partialorder %v2195, 8.507059e+37
        %v2197 = vand.u32 %v1949, 2147483648
        %v2198 = vor.u32 1.1754944e-38, %v2197
        %v2199 = vsel %vm2196, %v2198, %v2194
        %v2200 = vmul.f32 %v1831, %v2199
        %v2201 = vmul.f32 %v1833, %v2199
        %v2202 = vrcp.pop %v1952
        %v2203 = vmul.f32 %v1952, %v2202
        %v2204 = vsub.f32 1.0, %v2203
        %v2205 = vmul.f32 %v2202, %v2204
        %v2206 = vadd.f32 %v2202, %v2205
        %vm2207 = vweird.f32 %v1952
        %vm2208 = vweird.f32 %v2202
        %vm2209 = vmor %vm2207, %vm2208
        %v2210 = vsel %vm2209, %v2202, %v2206
        %v2211 = vand.u32 2147483647, %v1952
        %vm2212 = vcmp.eq.f32.partialorder %v2211, 8.507059e+37
        %v2213 = vand.u32 %v1952, 2147483648
        %v2214 = vor.u32 1.1754944e-38, %v2213
        %v2215 = vsel %vm2212, %v2214, %v2210
        %v2216 = vmul.f32 %v1835, %v2215
        %v2217 = vmul.f32 %v1837, %v2215
        %v2218 = vrcp.pop %v1955
        %v2219 = vmul.f32 %v1955, %v2218
        %v2220 = vsub.f32 1.0, %v2219
        %v2221 = vmul.f32 %v2218, %v2220
        %v2222 = vadd.f32 %v2218, %v2221
        %vm2223 = vweird.f32 %v1955
        %vm2224 = vweird.f32 %v2218
        %vm2225 = vmor %vm2223, %vm2224
        %v2226 = vsel %vm2225, %v2218, %v2222
        %v2227 = vand.u32 2147483647, %v1955
        %vm2228 = vcmp.eq.f32.partialorder %v2227, 8.507059e+37
        %v2229 = vand.u32 %v1955, 2147483648
        %v2230 = vor.u32 1.1754944e-38, %v2229
        %v2231 = vsel %vm2228, %v2230, %v2226
        %v2232 = vmul.f32 %v1839, %v2231
        %v2233 = vmul.f32 %v1841, %v2231
        %v2234 = vrcp.pop %v1958
        %v2235 = vmul.f32 %v1958, %v2234
        %v2236 = vsub.f32 1.0, %v2235
        %v2237 = vmul.f32 %v2234, %v2236
        %v2238 = vadd.f32 %v2234, %v2237
        %vm2239 = vweird.f32 %v1958
        %vm2240 = vweird.f32 %v2234
        %vm2241 = vmor %vm2239, %vm2240
        %v2242 = vsel %vm2241, %v2234, %v2238
        %v2243 = vand.u32 2147483647, %v1958
        %vm2244 = vcmp.eq.f32.partialorder %v2243, 8.507059e+37
        %v2245 = vand.u32 %v1958, 2147483648
        %v2246 = vor.u32 1.1754944e-38, %v2245
        %v2247 = vsel %vm2244, %v2246, %v2242
        %v2248 = vmul.f32 %v1843, %v2247
        %v2249 = vmul.f32 %v1845, %v2247
        %v2250 = vrcp.pop %v1961
        %v2251 = vmul.f32 %v1961, %v2250
        %v2252 = vsub.f32 1.0, %v2251
        %v2253 = vmul.f32 %v2250, %v2252
        %v2254 = vadd.f32 %v2250, %v2253
        %vm2255 = vweird.f32 %v1961
        %vm2256 = vweird.f32 %v2250
        %vm2257 = vmor %vm2255, %vm2256
        %v2258 = vsel %vm2257, %v2250, %v2254
        %v2259 = vand.u32 2147483647, %v1961
        %vm2260 = vcmp.eq.f32.partialorder %v2259, 8.507059e+37
        %v2261 = vand.u32 %v1961, 2147483648
        %v2262 = vor.u32 1.1754944e-38, %v2261
        %v2263 = vsel %vm2260, %v2262, %v2258
        %v2264 = vmul.f32 %v1847, %v2263
        %v2265 = vmul.f32 %v1849, %v2263
        %v2266 = vrcp.pop %v1964
        %v2267 = vmul.f32 %v1964, %v2266
        %v2268 = vsub.f32 1.0, %v2267
        %v2269 = vmul.f32 %v2266, %v2268
        %v2270 = vadd.f32 %v2266, %v2269
        %vm2271 = vweird.f32 %v1964
        %vm2272 = vweird.f32 %v2266
        %vm2273 = vmor %vm2271, %vm2272
        %v2274 = vsel %vm2273, %v2266, %v2270
        %v2275 = vand.u32 2147483647, %v1964
        %vm2276 = vcmp.eq.f32.partialorder %v2275, 8.507059e+37
        %v2277 = vand.u32 %v1964, 2147483648
        %v2278 = vor.u32 1.1754944e-38, %v2277
        %v2279 = vsel %vm2276, %v2278, %v2274
        %v2280 = vmul.f32 %v1851, %v2279
        %v2281 = vmul.f32 %v1853, %v2279
        %v2282 = vrcp.pop %v1967
        %v2283 = vmul.f32 %v1967, %v2282
        %v2284 = vsub.f32 1.0, %v2283
        %v2285 = vmul.f32 %v2282, %v2284
        %v2286 = vadd.f32 %v2282, %v2285
        %vm2287 = vweird.f32 %v1967
        %vm2288 = vweird.f32 %v2282
        %vm2289 = vmor %vm2287, %vm2288
        %v2290 = vsel %vm2289, %v2282, %v2286
        %v2291 = vand.u32 2147483647, %v1967
        %vm2292 = vcmp.eq.f32.partialorder %v2291, 8.507059e+37
        %v2293 = vand.u32 %v1967, 2147483648
        %v2294 = vor.u32 1.1754944e-38, %v2293
        %v2295 = vsel %vm2292, %v2294, %v2290
        %v2296 = vmul.f32 %v1855, %v2295
        %v2297 = vmul.f32 %v1857, %v2295
        %v2298 = vrcp.pop %v1970
        %v2299 = vmul.f32 %v1970, %v2298
        %v2300 = vsub.f32 1.0, %v2299
        %v2301 = vmul.f32 %v2298, %v2300
        %v2302 = vadd.f32 %v2298, %v2301
        %vm2303 = vweird.f32 %v1970
        %vm2304 = vweird.f32 %v2298
        %vm2305 = vmor %vm2303, %vm2304
        %v2306 = vsel %vm2305, %v2298, %v2302
        %v2307 = vand.u32 2147483647, %v1970
        %vm2308 = vcmp.eq.f32.partialorder %v2307, 8.507059e+37
        %v2309 = vand.u32 %v1970, 2147483648
        %v2310 = vor.u32 1.1754944e-38, %v2309
        %v2311 = vsel %vm2308, %v2310, %v2306
        %v2312 = vmul.f32 %v1859, %v2311
        %v2313 = vmul.f32 %v1861, %v2311
        %v2314 = vrcp.pop %v1973
        %v2315 = vmul.f32 %v1973, %v2314
        %v2316 = vsub.f32 1.0, %v2315
        %v2317 = vmul.f32 %v2314, %v2316
        %v2318 = vadd.f32 %v2314, %v2317
        %vm2319 = vweird.f32 %v1973
        %vm2320 = vweird.f32 %v2314
        %vm2321 = vmor %vm2319, %vm2320
        %v2322 = vsel %vm2321, %v2314, %v2318
        %v2323 = vand.u32 2147483647, %v1973
        %vm2324 = vcmp.eq.f32.partialorder %v2323, 8.507059e+37
        %v2325 = vand.u32 %v1973, 2147483648
        %v2326 = vor.u32 1.1754944e-38, %v2325
        %v2327 = vsel %vm2324, %v2326, %v2322
        %v2328 = vmul.f32 %v1863, %v2327
        %v2329 = vmul.f32 %v1865, %v2327
        %v2330 = vrcp.pop %v1976
        %v2331 = vmul.f32 %v1976, %v2330
        %v2332 = vsub.f32 1.0, %v2331
        %v2333 = vmul.f32 %v2330, %v2332
        %v2334 = vadd.f32 %v2330, %v2333
        %vm2335 = vweird.f32 %v1976
        %vm2336 = vweird.f32 %v2330
        %vm2337 = vmor %vm2335, %vm2336
        %v2338 = vsel %vm2337, %v2330, %v2334
        %v2339 = vand.u32 2147483647, %v1976
        %vm2340 = vcmp.eq.f32.partialorder %v2339, 8.507059e+37
        %v2341 = vand.u32 %v1976, 2147483648
        %v2342 = vor.u32 1.1754944e-38, %v2341
        %v2343 = vsel %vm2340, %v2342, %v2338
        %v2344 = vmul.f32 %v1867, %v2343
        %v2345 = vmul.f32 %v1869, %v2343
        %v2346 = vrcp.pop %v1979
        %v2347 = vmul.f32 %v1979, %v2346
        %v2348 = vsub.f32 1.0, %v2347
        %v2349 = vmul.f32 %v2346, %v2348
        %v2350 = vadd.f32 %v2346, %v2349
        %vm2351 = vweird.f32 %v1979
        %vm2352 = vweird.f32 %v2346
        %vm2353 = vmor %vm2351, %vm2352
        %v2354 = vsel %vm2353, %v2346, %v2350
        %v2355 = vand.u32 2147483647, %v1979
        %vm2356 = vcmp.eq.f32.partialorder %v2355, 8.507059e+37
        %v2357 = vand.u32 %v1979, 2147483648
        %v2358 = vor.u32 1.1754944e-38, %v2357
        %v2359 = vsel %vm2356, %v2358, %v2354
        %v2360 = vmul.f32 %v1871, %v2359
        %v2361 = vmul.f32 %v1873, %v2359
        %v2362 = vrcp.pop %v1982
        %v2363 = vmul.f32 %v1982, %v2362
        %v2364 = vsub.f32 1.0, %v2363
        %v2365 = vmul.f32 %v2362, %v2364
        %v2366 = vadd.f32 %v2362, %v2365
        %vm2367 = vweird.f32 %v1982
        %vm2368 = vweird.f32 %v2362
        %vm2369 = vmor %vm2367, %vm2368
        %v2370 = vsel %vm2369, %v2362, %v2366
        %v2371 = vand.u32 2147483647, %v1982
        %vm2372 = vcmp.eq.f32.partialorder %v2371, 8.507059e+37
        %v2373 = vand.u32 %v1982, 2147483648
        %v2374 = vor.u32 1.1754944e-38, %v2373
        %v2375 = vsel %vm2372, %v2374, %v2370
        %v2376 = vmul.f32 %v1875, %v2375
        %v2377 = vmul.f32 %v1877, %v2375
        %v2378 = vrcp.pop %v1985
        %v2379 = vmul.f32 %v1985, %v2378
        %v2380 = vsub.f32 1.0, %v2379
        %v2381 = vmul.f32 %v2378, %v2380
        %v2382 = vadd.f32 %v2378, %v2381
        %vm2383 = vweird.f32 %v1985
        %vm2384 = vweird.f32 %v2378
        %vm2385 = vmor %vm2383, %vm2384
        %v2386 = vsel %vm2385, %v2378, %v2382
        %v2387 = vand.u32 2147483647, %v1985
        %vm2388 = vcmp.eq.f32.partialorder %v2387, 8.507059e+37
        %v2389 = vand.u32 %v1985, 2147483648
        %v2390 = vor.u32 1.1754944e-38, %v2389
        %v2391 = vsel %vm2388, %v2390, %v2386
        %v2392 = vmul.f32 %v1879, %v2391
        %v2393 = vmul.f32 %v1881, %v2391
        %v2394 = vrcp.pop %v1988
        %v2395 = vmul.f32 %v1988, %v2394
        %v2396 = vsub.f32 1.0, %v2395
        %v2397 = vmul.f32 %v2394, %v2396
        %v2398 = vadd.f32 %v2394, %v2397
        %vm2399 = vweird.f32 %v1988
        %vm2400 = vweird.f32 %v2394
        %vm2401 = vmor %vm2399, %vm2400
        %v2402 = vsel %vm2401, %v2394, %v2398
        %v2403 = vand.u32 2147483647, %v1988
        %vm2404 = vcmp.eq.f32.partialorder %v2403, 8.507059e+37
        %v2405 = vand.u32 %v1988, 2147483648
        %v2406 = vor.u32 1.1754944e-38, %v2405
        %v2407 = vsel %vm2404, %v2406, %v2402
        %v2408 = vmul.f32 %v1883, %v2407
        %v2409 = vmul.f32 %v1885, %v2407
        %v2410 = vrcp.pop %v1991
        %v2411 = vmul.f32 %v1991, %v2410
        %v2412 = vsub.f32 1.0, %v2411
        %v2413 = vmul.f32 %v2410, %v2412
        %v2414 = vadd.f32 %v2410, %v2413
        %vm2415 = vweird.f32 %v1991
        %vm2416 = vweird.f32 %v2410
        %vm2417 = vmor %vm2415, %vm2416
        %v2418 = vsel %vm2417, %v2410, %v2414
        %v2419 = vand.u32 2147483647, %v1991
        %vm2420 = vcmp.eq.f32.partialorder %v2419, 8.507059e+37
        %v2421 = vand.u32 %v1991, 2147483648
        %v2422 = vor.u32 1.1754944e-38, %v2421
        %v2423 = vsel %vm2420, %v2422, %v2418
        %v2424 = vmul.f32 %v1887, %v2423
        %v2425 = vmul.f32 %v1889, %v2423
        %v2426 = vrcp.pop %v1994
        %v2427 = vmul.f32 %v1994, %v2426
        %v2428 = vsub.f32 1.0, %v2427
        %v2429 = vmul.f32 %v2426, %v2428
        %v2430 = vadd.f32 %v2426, %v2429
        %vm2431 = vweird.f32 %v1994
        %vm2432 = vweird.f32 %v2426
        %vm2433 = vmor %vm2431, %vm2432
        %v2434 = vsel %vm2433, %v2426, %v2430
        %v2435 = vand.u32 2147483647, %v1994
        %vm2436 = vcmp.eq.f32.partialorder %v2435, 8.507059e+37
        %v2437 = vand.u32 %v1994, 2147483648
        %v2438 = vor.u32 1.1754944e-38, %v2437
        %v2439 = vsel %vm2436, %v2438, %v2434
        %v2440 = vmul.f32 %v1891, %v2439
        %v2441 = vmul.f32 %v1893, %v2439
        %v2442 = vrcp.pop %v1997
        %v2443 = vmul.f32 %v1997, %v2442
        %v2444 = vsub.f32 1.0, %v2443
        %v2445 = vmul.f32 %v2442, %v2444
        %v2446 = vadd.f32 %v2442, %v2445
        %vm2447 = vweird.f32 %v1997
        %vm2448 = vweird.f32 %v2442
        %vm2449 = vmor %vm2447, %vm2448
        %v2450 = vsel %vm2449, %v2442, %v2446
        %v2451 = vand.u32 2147483647, %v1997
        %vm2452 = vcmp.eq.f32.partialorder %v2451, 8.507059e+37
        %v2453 = vand.u32 %v1997, 2147483648
        %v2454 = vor.u32 1.1754944e-38, %v2453
        %v2455 = vsel %vm2452, %v2454, %v2450
        %v2456 = vmul.f32 %v1895, %v2455
        %v2457 = vmul.f32 %v1897, %v2455
        %v2458 = vrcp.pop %v2000
        %v2459 = vmul.f32 %v2000, %v2458
        %v2460 = vsub.f32 1.0, %v2459
        %v2461 = vmul.f32 %v2458, %v2460
        %v2462 = vadd.f32 %v2458, %v2461
        %vm2463 = vweird.f32 %v2000
        %vm2464 = vweird.f32 %v2458
        %vm2465 = vmor %vm2463, %vm2464
        %v2466 = vsel %vm2465, %v2458, %v2462
        %v2467 = vand.u32 2147483647, %v2000
        %vm2468 = vcmp.eq.f32.partialorder %v2467, 8.507059e+37
        %v2469 = vand.u32 %v2000, 2147483648
        %v2470 = vor.u32 1.1754944e-38, %v2469
        %v2471 = vsel %vm2468, %v2470, %v2466
        %v2472 = vmul.f32 %v1899, %v2471
        %v2473 = vmul.f32 %v1901, %v2471
        %v2474 = vrcp.pop %v2003
        %v2475 = vmul.f32 %v2003, %v2474
        %v2476 = vsub.f32 1.0, %v2475
        %v2477 = vmul.f32 %v2474, %v2476
        %v2478 = vadd.f32 %v2474, %v2477
        %vm2479 = vweird.f32 %v2003
        %vm2480 = vweird.f32 %v2474
        %vm2481 = vmor %vm2479, %vm2480
        %v2482 = vsel %vm2481, %v2474, %v2478
        %v2483 = vand.u32 2147483647, %v2003
        %vm2484 = vcmp.eq.f32.partialorder %v2483, 8.507059e+37
        %v2485 = vand.u32 %v2003, 2147483648
        %v2486 = vor.u32 1.1754944e-38, %v2485
        %v2487 = vsel %vm2484, %v2486, %v2482
        %v2488 = vmul.f32 %v1903, %v2487
        %v2489 = vmul.f32 %v1905, %v2487
        %v2490 = vrcp.pop %v2006
        %v2491 = vmul.f32 %v2006, %v2490
        %v2492 = vsub.f32 1.0, %v2491
        %v2493 = vmul.f32 %v2490, %v2492
        %v2494 = vadd.f32 %v2490, %v2493
        %vm2495 = vweird.f32 %v2006
        %vm2496 = vweird.f32 %v2490
        %vm2497 = vmor %vm2495, %vm2496
        %v2498 = vsel %vm2497, %v2490, %v2494
        %v2499 = vand.u32 2147483647, %v2006
        %vm2500 = vcmp.eq.f32.partialorder %v2499, 8.507059e+37
        %v2501 = vand.u32 %v2006, 2147483648
        %v2502 = vor.u32 1.1754944e-38, %v2501
        %v2503 = vsel %vm2500, %v2502, %v2498
        %v2504 = vmul.f32 %v1907, %v2503
        %v2505 = vmul.f32 %v1909, %v2503
        %v2506 = vrcp.pop %v2009
        %v2507 = vmul.f32 %v2009, %v2506
        %v2508 = vsub.f32 1.0, %v2507
        %v2509 = vmul.f32 %v2506, %v2508
        %v2510 = vadd.f32 %v2506, %v2509
        %vm2511 = vweird.f32 %v2009
        %vm2512 = vweird.f32 %v2506
        %vm2513 = vmor %vm2511, %vm2512
        %v2514 = vsel %vm2513, %v2506, %v2510
        %v2515 = vand.u32 2147483647, %v2009
        %vm2516 = vcmp.eq.f32.partialorder %v2515, 8.507059e+37
        %v2517 = vand.u32 %v2009, 2147483648
        %v2518 = vor.u32 1.1754944e-38, %v2517
        %v2519 = vsel %vm2516, %v2518, %v2514
        %v2520 = vmul.f32 %v1911, %v2519
        %v2521 = vmul.f32 %v1913, %v2519
        %2522 = vmatpush.msra.mxu0 %v1094
        %2523 = vmatpush.msra.mxu0 %v1091
        %2524 = vmatpush.msra.mxu0 %v1088
        %2525 = vmatpush.msra.mxu0 %v1085
        %2526 = vmatpush.msra.mxu0 %v1082
        %2527 = vmatpush.msra.mxu0 %v1079
        %2528 = vmatpush.msra.mxu0 %v1076
        %2529 = vmatpush.msra.mxu0 %v1073
        %2530 = vmatpush.msra.mxu0 %v1070
        %2531 = vmatpush.msra.mxu0 %v1067
        %2532 = vmatpush.msra.mxu0 %v1064
        %2533 = vmatpush.msra.mxu0 %v1061
        %2534 = vmatpush.msra.mxu0 %v1058
        %2535 = vmatpush.msra.mxu0 %v1055
        %2536 = vmatpush.msra.mxu0 %v1052
        %2537 = vmatpush.msra.mxu0 %v1049
        %2538 = vmatmul.f32.gmra.mxu0 %v2024
        %v2539 = vpop.f32.mrf.mxu0
        %v2540 = vadd.f32 0.0, %v2539
        %2541 = vmatmul.f32.gmra.mxu0 %v2040
        %v2542 = vpop.f32.mrf.mxu0
        %v2543 = vadd.f32 0.0, %v2542
        %2544 = vmatmul.f32.gmra.mxu0 %v2056
        %v2545 = vpop.f32.mrf.mxu0
        %v2546 = vadd.f32 0.0, %v2545
        %2547 = vmatmul.f32.gmra.mxu0 %v2072
        %v2548 = vpop.f32.mrf.mxu0
        %v2549 = vadd.f32 0.0, %v2548
        %2550 = vmatmul.f32.gmra.mxu0 %v2088
        %v2551 = vpop.f32.mrf.mxu0
        %v2552 = vadd.f32 0.0, %v2551
        %2553 = vmatmul.f32.gmra.mxu0 %v2104
        %v2554 = vpop.f32.mrf.mxu0
        %v2555 = vadd.f32 0.0, %v2554
        %2556 = vmatmul.f32.gmra.mxu0 %v2120
        %v2557 = vpop.f32.mrf.mxu0
        %v2558 = vadd.f32 0.0, %v2557
        %2559 = vmatmul.f32.gmra.mxu0 %v2136
        %v2560 = vpop.f32.mrf.mxu0
        %v2561 = vadd.f32 0.0, %v2560
        %2562 = vmatmul.f32.gmra.mxu0 %v2152
        %v2563 = vpop.f32.mrf.mxu0
        %v2564 = vadd.f32 0.0, %v2563
        %2565 = vmatmul.f32.gmra.mxu0 %v2168
        %v2566 = vpop.f32.mrf.mxu0
        %v2567 = vadd.f32 0.0, %v2566
        %2568 = vmatmul.f32.gmra.mxu0 %v2184
        %v2569 = vpop.f32.mrf.mxu0
        %v2570 = vadd.f32 0.0, %v2569
        %2571 = vmatmul.f32.gmra.mxu0 %v2200
        %v2572 = vpop.f32.mrf.mxu0
        %v2573 = vadd.f32 0.0, %v2572
        %2574 = vmatmul.f32.gmra.mxu0 %v2216
        %v2575 = vpop.f32.mrf.mxu0
        %v2576 = vadd.f32 0.0, %v2575
        %2577 = vmatmul.f32.gmra.mxu0 %v2232
        %v2578 = vpop.f32.mrf.mxu0
        %v2579 = vadd.f32 0.0, %v2578
        %2580 = vmatmul.f32.gmra.mxu0 %v2248
        %v2581 = vpop.f32.mrf.mxu0
        %v2582 = vadd.f32 0.0, %v2581
        %2583 = vmatmul.f32.gmra.mxu0 %v2264
        %v2584 = vpop.f32.mrf.mxu0
        %v2585 = vadd.f32 0.0, %v2584
        %2586 = vmatmul.f32.gmra.mxu0 %v2280
        %v2587 = vpop.f32.mrf.mxu0
        %v2588 = vadd.f32 0.0, %v2587
        %2589 = vmatmul.f32.gmra.mxu0 %v2296
        %v2590 = vpop.f32.mrf.mxu0
        %v2591 = vadd.f32 0.0, %v2590
        %2592 = vmatmul.f32.gmra.mxu0 %v2312
        %v2593 = vpop.f32.mrf.mxu0
        %v2594 = vadd.f32 0.0, %v2593
        %2595 = vmatmul.f32.gmra.mxu0 %v2328
        %v2596 = vpop.f32.mrf.mxu0
        %v2597 = vadd.f32 0.0, %v2596
        %2598 = vmatmul.f32.gmra.mxu0 %v2344
        %v2599 = vpop.f32.mrf.mxu0
        %v2600 = vadd.f32 0.0, %v2599
        %2601 = vmatmul.f32.gmra.mxu0 %v2360
        %v2602 = vpop.f32.mrf.mxu0
        %v2603 = vadd.f32 0.0, %v2602
        %2604 = vmatmul.f32.gmra.mxu0 %v2376
        %v2605 = vpop.f32.mrf.mxu0
        %v2606 = vadd.f32 0.0, %v2605
        %2607 = vmatmul.f32.gmra.mxu0 %v2392
        %v2608 = vpop.f32.mrf.mxu0
        %v2609 = vadd.f32 0.0, %v2608
        %2610 = vmatmul.f32.gmra.mxu0 %v2408
        %v2611 = vpop.f32.mrf.mxu0
        %v2612 = vadd.f32 0.0, %v2611
        %2613 = vmatmul.f32.gmra.mxu0 %v2424
        %v2614 = vpop.f32.mrf.mxu0
        %v2615 = vadd.f32 0.0, %v2614
        %2616 = vmatmul.f32.gmra.mxu0 %v2440
        %v2617 = vpop.f32.mrf.mxu0
        %v2618 = vadd.f32 0.0, %v2617
        %2619 = vmatmul.f32.gmra.mxu0 %v2456
        %v2620 = vpop.f32.mrf.mxu0
        %v2621 = vadd.f32 0.0, %v2620
        %2622 = vmatmul.f32.gmra.mxu0 %v2472
        %v2623 = vpop.f32.mrf.mxu0
        %v2624 = vadd.f32 0.0, %v2623
        %2625 = vmatmul.f32.gmra.mxu0 %v2488
        %v2626 = vpop.f32.mrf.mxu0
        %v2627 = vadd.f32 0.0, %v2626
        %2628 = vmatmul.f32.gmra.mxu0 %v2504
        %v2629 = vpop.f32.mrf.mxu0
        %v2630 = vadd.f32 0.0, %v2629
        %2631 = vmatmul.f32.gmra.mxu0 %v2520
        %v2632 = vpop.f32.mrf.mxu0
        %v2633 = vadd.f32 0.0, %v2632
        %2634 = vdwg.mxu0
        %2635 = vmatpush.msra.mxu0 %v1142
        %2636 = vmatpush.msra.mxu0 %v1139
        %2637 = vmatpush.msra.mxu0 %v1136
        %2638 = vmatpush.msra.mxu0 %v1133
        %2639 = vmatpush.msra.mxu0 %v1130
        %2640 = vmatpush.msra.mxu0 %v1127
        %2641 = vmatpush.msra.mxu0 %v1124
        %2642 = vmatpush.msra.mxu0 %v1121
        %2643 = vmatpush.msra.mxu0 %v1118
        %2644 = vmatpush.msra.mxu0 %v1115
        %2645 = vmatpush.msra.mxu0 %v1112
        %2646 = vmatpush.msra.mxu0 %v1109
        %2647 = vmatpush.msra.mxu0 %v1106
        %2648 = vmatpush.msra.mxu0 %v1103
        %2649 = vmatpush.msra.mxu0 %v1100
        %2650 = vmatpush.msra.mxu0 %v1097
        %2651 = vmatmul.f32.gmra.mxu0 %v2025
        %v2652 = vpop.f32.mrf.mxu0
        %v2653 = vadd.f32 %v2540, %v2652
        %2654 = vmatmul.f32.gmra.mxu0 %v2041
        %v2655 = vpop.f32.mrf.mxu0
        %v2656 = vadd.f32 %v2543, %v2655
        %2657 = vmatmul.f32.gmra.mxu0 %v2057
        %v2658 = vpop.f32.mrf.mxu0
        %v2659 = vadd.f32 %v2546, %v2658
        %2660 = vmatmul.f32.gmra.mxu0 %v2073
        %v2661 = vpop.f32.mrf.mxu0
        %v2662 = vadd.f32 %v2549, %v2661
        %2663 = vmatmul.f32.gmra.mxu0 %v2089
        %v2664 = vpop.f32.mrf.mxu0
        %v2665 = vadd.f32 %v2552, %v2664
        %2666 = vmatmul.f32.gmra.mxu0 %v2105
        %v2667 = vpop.f32.mrf.mxu0
        %v2668 = vadd.f32 %v2555, %v2667
        %2669 = vmatmul.f32.gmra.mxu0 %v2121
        %v2670 = vpop.f32.mrf.mxu0
        %v2671 = vadd.f32 %v2558, %v2670
        %2672 = vmatmul.f32.gmra.mxu0 %v2137
        %v2673 = vpop.f32.mrf.mxu0
        %v2674 = vadd.f32 %v2561, %v2673
        %2675 = vmatmul.f32.gmra.mxu0 %v2153
        %v2676 = vpop.f32.mrf.mxu0
        %v2677 = vadd.f32 %v2564, %v2676
        %2678 = vmatmul.f32.gmra.mxu0 %v2169
        %v2679 = vpop.f32.mrf.mxu0
        %v2680 = vadd.f32 %v2567, %v2679
        %2681 = vmatmul.f32.gmra.mxu0 %v2185
        %v2682 = vpop.f32.mrf.mxu0
        %v2683 = vadd.f32 %v2570, %v2682
        %2684 = vmatmul.f32.gmra.mxu0 %v2201
        %v2685 = vpop.f32.mrf.mxu0
        %v2686 = vadd.f32 %v2573, %v2685
        %2687 = vmatmul.f32.gmra.mxu0 %v2217
        %v2688 = vpop.f32.mrf.mxu0
        %v2689 = vadd.f32 %v2576, %v2688
        %2690 = vmatmul.f32.gmra.mxu0 %v2233
        %v2691 = vpop.f32.mrf.mxu0
        %v2692 = vadd.f32 %v2579, %v2691
        %2693 = vmatmul.f32.gmra.mxu0 %v2249
        %v2694 = vpop.f32.mrf.mxu0
        %v2695 = vadd.f32 %v2582, %v2694
        %2696 = vmatmul.f32.gmra.mxu0 %v2265
        %v2697 = vpop.f32.mrf.mxu0
        %v2698 = vadd.f32 %v2585, %v2697
        %2699 = vmatmul.f32.gmra.mxu0 %v2281
        %v2700 = vpop.f32.mrf.mxu0
        %v2701 = vadd.f32 %v2588, %v2700
        %2702 = vmatmul.f32.gmra.mxu0 %v2297
        %v2703 = vpop.f32.mrf.mxu0
        %v2704 = vadd.f32 %v2591, %v2703
        %2705 = vmatmul.f32.gmra.mxu0 %v2313
        %v2706 = vpop.f32.mrf.mxu0
        %v2707 = vadd.f32 %v2594, %v2706
        %2708 = vmatmul.f32.gmra.mxu0 %v2329
        %v2709 = vpop.f32.mrf.mxu0
        %v2710 = vadd.f32 %v2597, %v2709
        %2711 = vmatmul.f32.gmra.mxu0 %v2345
        %v2712 = vpop.f32.mrf.mxu0
        %v2713 = vadd.f32 %v2600, %v2712
        %2714 = vmatmul.f32.gmra.mxu0 %v2361
        %v2715 = vpop.f32.mrf.mxu0
        %v2716 = vadd.f32 %v2603, %v2715
        %2717 = vmatmul.f32.gmra.mxu0 %v2377
        %v2718 = vpop.f32.mrf.mxu0
        %v2719 = vadd.f32 %v2606, %v2718
        %2720 = vmatmul.f32.gmra.mxu0 %v2393
        %v2721 = vpop.f32.mrf.mxu0
        %v2722 = vadd.f32 %v2609, %v2721
        %2723 = vmatmul.f32.gmra.mxu0 %v2409
        %v2724 = vpop.f32.mrf.mxu0
        %v2725 = vadd.f32 %v2612, %v2724
        %2726 = vmatmul.f32.gmra.mxu0 %v2425
        %v2727 = vpop.f32.mrf.mxu0
        %v2728 = vadd.f32 %v2615, %v2727
        %2729 = vmatmul.f32.gmra.mxu0 %v2441
        %v2730 = vpop.f32.mrf.mxu0
        %v2731 = vadd.f32 %v2618, %v2730
        %2732 = vmatmul.f32.gmra.mxu0 %v2457
        %v2733 = vpop.f32.mrf.mxu0
        %v2734 = vadd.f32 %v2621, %v2733
        %2735 = vmatmul.f32.gmra.mxu0 %v2473
        %v2736 = vpop.f32.mrf.mxu0
        %v2737 = vadd.f32 %v2624, %v2736
        %2738 = vmatmul.f32.gmra.mxu0 %v2489
        %v2739 = vpop.f32.mrf.mxu0
        %v2740 = vadd.f32 %v2627, %v2739
        %2741 = vmatmul.f32.gmra.mxu0 %v2505
        %v2742 = vpop.f32.mrf.mxu0
        %v2743 = vadd.f32 %v2630, %v2742
        %2744 = vmatmul.f32.gmra.mxu0 %v2521
        %v2745 = vpop.f32.mrf.mxu0
        %v2746 = vadd.f32 %v2633, %v2745
        %2747 = vdwg.mxu0
        %v2748 = vld [vmem:[#allocation7] sm:$0xff]
        %v2749 = vld [vmem:[#allocation7 + $0x8] sm:$0xff]
        %v2750 = vld [vmem:[#allocation7 + $0x10] sm:$0xff]
        %v2751 = vld [vmem:[#allocation7 + $0x18] sm:$0xff]
        %v2752 = vld [vmem:[%s10] sm:$0x1]
        %v2754 = vperm.slane %v2752, 0
        %v2757 = vsel %vm692, %v2653, 0
        %v2760 = vsel %vm692, %v2656, 0
        %v2763 = vsel %vm692, %v2659, 0
        %v2766 = vsel %vm692, %v2662, 0
        %v2769 = vsel %vm692, %v2665, 0
        %v2772 = vsel %vm692, %v2668, 0
        %v2775 = vsel %vm692, %v2671, 0
        %v2778 = vsel %vm692, %v2674, 0
        %v2781 = vsel %vm692, %v2677, 0
        %v2784 = vsel %vm692, %v2680, 0
        %v2787 = vsel %vm692, %v2683, 0
        %v2790 = vsel %vm692, %v2686, 0
        %v2793 = vsel %vm692, %v2689, 0
        %v2796 = vsel %vm692, %v2692, 0
        %v2799 = vsel %vm692, %v2695, 0
        %v2802 = vsel %vm692, %v2698, 0
        %v2805 = vsel %vm692, %v2701, 0
        %v2808 = vsel %vm692, %v2704, 0
        %v2811 = vsel %vm692, %v2707, 0
        %v2814 = vsel %vm692, %v2710, 0
        %v2817 = vsel %vm692, %v2713, 0
        %v2820 = vsel %vm692, %v2716, 0
        %v2823 = vsel %vm692, %v2719, 0
        %v2826 = vsel %vm692, %v2722, 0
        %v2829 = vsel %vm692, %v2725, 0
        %v2832 = vsel %vm692, %v2728, 0
        %v2835 = vsel %vm692, %v2731, 0
        %v2838 = vsel %vm692, %v2734, 0
        %v2841 = vsel %vm692, %v2737, 0
        %v2844 = vsel %vm692, %v2740, 0
        %v2847 = vsel %vm692, %v2743, 0
        %v2850 = vsel %vm692, %v2746, 0
        %2852 = vmatpush.msra.mxu0 0.0
        %2853 = vmatpush.msra.mxu0 0.0
        %2854 = vmatpush.msra.mxu0 0.0
        %2855 = vmatpush.msra.mxu0 0.0
        %2856 = vmatpush.msra.mxu0 0.0
        %2857 = vmatpush.msra.mxu0 0.0
        %2858 = vmatpush.msra.mxu0 0.0
        %2859 = vmatpush.msra.mxu0 0.0
        %2860 = vmatpush.msra.mxu0 0.0
        %2861 = vmatpush.msra.mxu0 0.0
        %2862 = vmatpush.msra.mxu0 0.0
        %2863 = vmatpush.msra.mxu0 0.0
        %2864 = vmatpush.msra.mxu0 %v2751
        %2865 = vmatpush.msra.mxu0 %v2750
        %2866 = vmatpush.msra.mxu0 %v2749
        %2867 = vmatpush.msra.mxu0 %v2748
        %2868 = vmatmul.f32.gmra.mxu0 %v2757
        %v2869 = vpop.f32.mrf.mxu0
        %v2870 = vadd.f32 %v2754, %v2869
        %2871 = vmatmul.f32.gmra.mxu0 %v2760
        %v2872 = vpop.f32.mrf.mxu0
        %v2873 = vadd.f32 %v2754, %v2872
        %2874 = vmatmul.f32.gmra.mxu0 %v2763
        %v2875 = vpop.f32.mrf.mxu0
        %v2876 = vadd.f32 %v2754, %v2875
        %2877 = vmatmul.f32.gmra.mxu0 %v2766
        %v2878 = vpop.f32.mrf.mxu0
        %v2879 = vadd.f32 %v2754, %v2878
        %2880 = vmatmul.f32.gmra.mxu0 %v2769
        %v2881 = vpop.f32.mrf.mxu0
        %v2882 = vadd.f32 %v2754, %v2881
        %2883 = vmatmul.f32.gmra.mxu0 %v2772
        %v2884 = vpop.f32.mrf.mxu0
        %v2885 = vadd.f32 %v2754, %v2884
        %2886 = vmatmul.f32.gmra.mxu0 %v2775
        %v2887 = vpop.f32.mrf.mxu0
        %v2888 = vadd.f32 %v2754, %v2887
        %2889 = vmatmul.f32.gmra.mxu0 %v2778
        %v2890 = vpop.f32.mrf.mxu0
        %v2891 = vadd.f32 %v2754, %v2890
        %2892 = vmatmul.f32.gmra.mxu0 %v2781
        %v2893 = vpop.f32.mrf.mxu0
        %v2894 = vadd.f32 %v2754, %v2893
        %2895 = vmatmul.f32.gmra.mxu0 %v2784
        %v2896 = vpop.f32.mrf.mxu0
        %v2897 = vadd.f32 %v2754, %v2896
        %2898 = vmatmul.f32.gmra.mxu0 %v2787
        %v2899 = vpop.f32.mrf.mxu0
        %v2900 = vadd.f32 %v2754, %v2899
        %2901 = vmatmul.f32.gmra.mxu0 %v2790
        %v2902 = vpop.f32.mrf.mxu0
        %v2903 = vadd.f32 %v2754, %v2902
        %2904 = vmatmul.f32.gmra.mxu0 %v2793
        %v2905 = vpop.f32.mrf.mxu0
        %v2906 = vadd.f32 %v2754, %v2905
        %2907 = vmatmul.f32.gmra.mxu0 %v2796
        %v2908 = vpop.f32.mrf.mxu0
        %v2909 = vadd.f32 %v2754, %v2908
        %2910 = vmatmul.f32.gmra.mxu0 %v2799
        %v2911 = vpop.f32.mrf.mxu0
        %v2912 = vadd.f32 %v2754, %v2911
        %2913 = vmatmul.f32.gmra.mxu0 %v2802
        %v2914 = vpop.f32.mrf.mxu0
        %v2915 = vadd.f32 %v2754, %v2914
        %2916 = vmatmul.f32.gmra.mxu0 %v2805
        %v2917 = vpop.f32.mrf.mxu0
        %v2918 = vadd.f32 %v2754, %v2917
        %2919 = vmatmul.f32.gmra.mxu0 %v2808
        %v2920 = vpop.f32.mrf.mxu0
        %v2921 = vadd.f32 %v2754, %v2920
        %2922 = vmatmul.f32.gmra.mxu0 %v2811
        %v2923 = vpop.f32.mrf.mxu0
        %v2924 = vadd.f32 %v2754, %v2923
        %2925 = vmatmul.f32.gmra.mxu0 %v2814
        %v2926 = vpop.f32.mrf.mxu0
        %v2927 = vadd.f32 %v2754, %v2926
        %2928 = vmatmul.f32.gmra.mxu0 %v2817
        %v2929 = vpop.f32.mrf.mxu0
        %v2930 = vadd.f32 %v2754, %v2929
        %2931 = vmatmul.f32.gmra.mxu0 %v2820
        %v2932 = vpop.f32.mrf.mxu0
        %v2933 = vadd.f32 %v2754, %v2932
        %2934 = vmatmul.f32.gmra.mxu0 %v2823
        %v2935 = vpop.f32.mrf.mxu0
        %v2936 = vadd.f32 %v2754, %v2935
        %2937 = vmatmul.f32.gmra.mxu0 %v2826
        %v2938 = vpop.f32.mrf.mxu0
        %v2939 = vadd.f32 %v2754, %v2938
        %2940 = vmatmul.f32.gmra.mxu0 %v2829
        %v2941 = vpop.f32.mrf.mxu0
        %v2942 = vadd.f32 %v2754, %v2941
        %2943 = vmatmul.f32.gmra.mxu0 %v2832
        %v2944 = vpop.f32.mrf.mxu0
        %v2945 = vadd.f32 %v2754, %v2944
        %2946 = vmatmul.f32.gmra.mxu0 %v2835
        %v2947 = vpop.f32.mrf.mxu0
        %v2948 = vadd.f32 %v2754, %v2947
        %2949 = vmatmul.f32.gmra.mxu0 %v2838
        %v2950 = vpop.f32.mrf.mxu0
        %v2951 = vadd.f32 %v2754, %v2950
        %2952 = vmatmul.f32.gmra.mxu0 %v2841
        %v2953 = vpop.f32.mrf.mxu0
        %v2954 = vadd.f32 %v2754, %v2953
        %2955 = vmatmul.f32.gmra.mxu0 %v2844
        %v2956 = vpop.f32.mrf.mxu0
        %v2957 = vadd.f32 %v2754, %v2956
        %2958 = vmatmul.f32.gmra.mxu0 %v2847
        %v2959 = vpop.f32.mrf.mxu0
        %v2960 = vadd.f32 %v2754, %v2959
        %2961 = vmatmul.f32.gmra.mxu0 %v2850
        %v2962 = vpop.f32.mrf.mxu0
        %v2963 = vadd.f32 %v2754, %v2962
        %2964 = vdwg.mxu0
        %2965 = vxpose.xlu0.b32.start [1/16] %v2870, 128
        %2966 = vxpose.xlu0.b32.cont [2/16] %v2873, 128
        %2967 = vxpose.xlu0.b32.cont [3/16] %v2876, 128
        %2968 = vxpose.xlu0.b32.cont [4/16] %v2879, 128
        %2969 = vxpose.xlu0.b32.cont [5/16] %v2882, 128
        %2970 = vxpose.xlu0.b32.cont [6/16] %v2885, 128
        %2971 = vxpose.xlu0.b32.cont [7/16] %v2888, 128
        %2972 = vxpose.xlu0.b32.cont [8/16] %v2891, 128
        %2973 = vxpose.xlu0.b32.cont [9/16] %v2894, 128
        %2974 = vxpose.xlu0.b32.cont [10/16] %v2897, 128
        %2975 = vxpose.xlu0.b32.cont [11/16] %v2900, 128
        %2976 = vxpose.xlu0.b32.cont [12/16] %v2903, 128
        %2977 = vxpose.xlu0.b32.cont [13/16] %v2906, 128
        %2978 = vxpose.xlu0.b32.cont [14/16] %v2909, 128
        %2979 = vxpose.xlu0.b32.cont [15/16] %v2912, 128
        %2980 = vxpose.xlu0.b32.end [16/16] %v2915, 128
        %v2981 = vpop.trf.xlu0
        %v2982 = vpop.trf.xlu0
        %v2983 = vpop.trf.xlu0
        %v2984 = vpop.trf.xlu0
        %v2985 = vpop.trf.xlu0
        %v2986 = vpop.trf.xlu0
        %v2987 = vpop.trf.xlu0
        %v2988 = vpop.trf.xlu0
        %v2989 = vpop.trf.xlu0
        %v2990 = vpop.trf.xlu0
        %v2991 = vpop.trf.xlu0
        %v2992 = vpop.trf.xlu0
        %v2993 = vpop.trf.xlu0
        %v2994 = vpop.trf.xlu0
        %v2995 = vpop.trf.xlu0
        %v2996 = vpop.trf.xlu0
        %2997 = vxpose.xlu0.b32.start [1/16] %v2918, 128
        %2998 = vxpose.xlu0.b32.cont [2/16] %v2921, 128
        %2999 = vxpose.xlu0.b32.cont [3/16] %v2924, 128
        %3000 = vxpose.xlu0.b32.cont [4/16] %v2927, 128
        %3001 = vxpose.xlu0.b32.cont [5/16] %v2930, 128
        %3002 = vxpose.xlu0.b32.cont [6/16] %v2933, 128
        %3003 = vxpose.xlu0.b32.cont [7/16] %v2936, 128
        %3004 = vxpose.xlu0.b32.cont [8/16] %v2939, 128
        %3005 = vxpose.xlu0.b32.cont [9/16] %v2942, 128
        %3006 = vxpose.xlu0.b32.cont [10/16] %v2945, 128
        %3007 = vxpose.xlu0.b32.cont [11/16] %v2948, 128
        %3008 = vxpose.xlu0.b32.cont [12/16] %v2951, 128
        %3009 = vxpose.xlu0.b32.cont [13/16] %v2954, 128
        %3010 = vxpose.xlu0.b32.cont [14/16] %v2957, 128
        %3011 = vxpose.xlu0.b32.cont [15/16] %v2960, 128
        %3012 = vxpose.xlu0.b32.end [16/16] %v2963, 128
        %v3013 = vpop.trf.xlu0
        %v3014 = vpop.trf.xlu0
        %v3015 = vpop.trf.xlu0
        %v3016 = vpop.trf.xlu0
        %v3017 = vpop.trf.xlu0
        %v3018 = vpop.trf.xlu0
        %v3019 = vpop.trf.xlu0
        %v3020 = vpop.trf.xlu0
        %v3021 = vpop.trf.xlu0
        %v3022 = vpop.trf.xlu0
        %v3023 = vpop.trf.xlu0
        %v3024 = vpop.trf.xlu0
        %v3025 = vpop.trf.xlu0
        %v3026 = vpop.trf.xlu0
        %v3027 = vpop.trf.xlu0
        %v3028 = vpop.trf.xlu0
        %v3029 = vadd.f32 %v440, %v2981
        %v3030 = vadd.f32 %v441, %v3013
        %v3031 = vadd.f32 %v442, %v2982
        %v3032 = vadd.f32 %v443, %v3014
        %v3033 = vadd.f32 %v444, %v2983
        %v3034 = vadd.f32 %v445, %v3015
        %v3035 = vadd.f32 %v446, %v2984
        %v3036 = vadd.f32 %v447, %v3016
        %3037 = vst [vmem:[%s439] sm:$0xff] %v3029
        %3038 = vst [vmem:[%s439 + $0x8] sm:$0xff] %v3030
        %3039 = vst [vmem:[%s439 + $0x10] sm:$0xff] %v3031
        %3040 = vst [vmem:[%s439 + $0x18] sm:$0xff] %v3032
        %3041 = vst [vmem:[%s439 + $0x20] sm:$0xff] %v3033
        %3042 = vst [vmem:[%s439 + $0x28] sm:$0xff] %v3034
        %3043 = vst [vmem:[%s439 + $0x30] sm:$0xff] %v3035
        %3044 = vst [vmem:[%s439 + $0x38] sm:$0xff] %v3036
        %s3045 = sand.u32 %s273, 1
        %s3046 = scalar_lea.sflag [#allocation4], %s3045
        %s3047 = sand.u32 %s273, 1
        %s3048 = smul.addr %s3047, 64
        %s3049 = scalar_lea.vmem [#allocation8], %s3048
        // Predicated region
        $region77: #{tpu_custom_call.1} parent=63 // pred_check
          %p3050 = pneg %p283
        $region78: #{tpu_custom_call.1} parent=63 // pred_check_branch
          %3052 = sbr.rel (%p3050) target = $region80
        $region79: #{tpu_custom_call.1} parent=63 // pred_region
          %3054 = vsyncadd %s3046, 0
          %s3055 = smul.addr %s29, 8
          %s3056 = smul.addr %s3055, 8
          %s3057 = scalar_lea.hbm %s11, %s3056
          %s3058 = sshll.u32 %s3049, 4
          %s3059 = int_to_ptr.vmem [resolvable:$true] %s3058
          %s3060 = sshll.u32 %s3057, 4
          %s3061 = int_to_ptr.hbm [resolvable:$true] %s3060
          %3066 = dma.vmem_to_hbm [thread:$0]  %s3059, 1024, %s3061, %s3046, 256, 256, 16
        $region80: #{tpu_custom_call.1} parent=63 // pred_fallthru
          _
      $region64: #{tpu_custom_call.1} parent=5 // pred_fallthru
        _
      %p3067 = scmp.le.s32.totalorder 2, %s24
      // Predicated region
      $region81: #{tpu_custom_call.1} parent=5 // pred_check
        %p3068 = pneg %p3067
      $region82: #{tpu_custom_call.1} parent=5 // pred_check_branch
        %3070 = sbr.rel (%p3068) target = $region84
      $region83: #{tpu_custom_call.1} parent=5 // pred_region
        %s3071 = ssub.s32 %s24, 2
        // Predicated region
        $region85: #{tpu_custom_call.1} parent=83 // pred_check
          %p3072 = pneg %p289
        $region86: #{tpu_custom_call.1} parent=83 // pred_check_branch
          %3074 = sbr.rel (%p3072) target = $region88
        $region87: #{tpu_custom_call.1} parent=83 // pred_region
          %s3075 = sand.u32 %s274, 1
          %s3076 = scalar_lea.sflag [#allocation4], %s3075
          %s3077 = sand.u32 %s274, 1
          %s3078 = smul.addr %s3077, 64
          %s3079 = scalar_lea.vmem [#allocation8], %s3078
          %3081 = dma.done %s3076, 1024
        $region88: #{tpu_custom_call.1} parent=83 // pred_fallthru
          _
      $region84: #{tpu_custom_call.1} parent=5 // pred_fallthru
        _
    $region6: #{tpu_custom_call.1} parent=1 // loop_footer
      %s28 = sadd.s32 1, %s24
    $region7: #{tpu_custom_call.1} parent=1 // loop_footer_branch
      %23 = sbr.rel target = $region3
    $region8: #{tpu_custom_call.1} parent=1 // loop_exit
      _
    %3082 = vsyncpa [#allocation3], 1
    %s3083 = scalar_lea.sflag [#allocation3], 1
    %3084 = vsyncpa %s3083, 1
    %3085 = vsyncpa [#allocation6], 1
    %3086 = vsyncpa [#allocation4], 1
    %s3087 = scalar_lea.sflag [#allocation4], 1
    %3088 = vsyncpa %s3087, 1

</llo_original>
